<compile_context>
chip_gen: v6e
topology: v6e:2x2x1
jax: 0.10.0
libtpu: 0.0.40
codegen_flags: <defaults>
</compile_context>

<pallas_src>
import functools

import jax
import jax.numpy as jnp
from jax.experimental import pallas as pl
from jax.experimental.pallas import tpu as pltpu

LANE = 128


# ------------------------------ Pallas kernel -------------------------------

def _fused_conv_bn_relu_kernel(p_ref, w_ref, g_ref, b_ref, o_ref,
                               acc_ref, sum_ref, sq_ref, scale_ref, shift_ref,
                               *, tp, cout, pack, m_real, eps):
    """grid = (phase, tile).  phase 0: conv+stats.  phase 1: BN+ReLU writeback."""
    phase = pl.program_id(0)
    i = pl.program_id(1)

    @pl.when(jnp.logical_and(phase == 0, i == 0))
    def _():
        sum_ref[...] = jnp.zeros_like(sum_ref)
        sq_ref[...] = jnp.zeros_like(sq_ref)

    @pl.when(phase == 0)
    def _():
        # (tp, pack*K) x (pack*K, pack*Cout) block-diagonal matmul: output lane
        # l = g*Cout + c holds conv row (pack*i_packed + g), channel c.  f32 MXU
        # accumulation; result goes to the VMEM-resident packed slab.
        y = jnp.dot(p_ref[...], w_ref[...], preferred_element_type=jnp.float32)
        row = pl.multiple_of(i * tp, tp)
        acc_ref[pl.ds(row, tp), :] = y
        # Packed (group, channel) partial sums: only ~tp/8 dense vregs per tile.
        sum_ref[...] += jnp.sum(y, axis=0, keepdims=True)
        sq_ref[...] += jnp.sum(y * y, axis=0, keepdims=True)

    @pl.when(jnp.logical_and(phase == 1, i == 0))
    def _():
        # Reduce the per-(group, channel) partials over the `pack` lane groups
        # with XLU shift-adds; every lane ends up holding its channel's total,
        # i.e. the result is already broadcast back into the packed lane layout.
        s_tot = sum_ref[...]
        q_tot = sq_ref[...]
        sh = cout
        while sh < cout * pack:            # static python loop -> unrolled
            s_tot = s_tot + pltpu.roll(s_tot, shift=sh, axis=1)
            q_tot = q_tot + pltpu.roll(q_tot, shift=sh, axis=1)
            sh *= 2
        inv_m = jnp.float32(1.0 / m_real)
        mean = s_tot * inv_m
        # Zero-padded patch rows contribute 0 to both sums, so dividing by the
        # real M is exact (biased variance, PyTorch train-mode BatchNorm).
        var = jnp.maximum(q_tot * inv_m - mean * mean, 0.0)
        inv_std = jax.lax.rsqrt(var + jnp.float32(eps))          # EUP slot
        scale_ref[...] = g_ref[...] * inv_std
        shift_ref[...] = b_ref[...] - mean * scale_ref[...]

    @pl.when(phase == 1)
    def _():
        row = pl.multiple_of(i * tp, tp)
        y = acc_ref[pl.ds(row, tp), :]
        o_ref[...] = jnp.maximum(y * scale_ref[...] + shift_ref[...],
                                 0.0).astype(o_ref.dtype)


# ------------------------------- glue (JAX) ---------------------------------

def _im2col(x_nthwc, ksize, stride, padding):
    kt, kh, kw = ksize
    st, sh, sw = stride
    pt, ph, pw = padding
    N, T, H, W, C = x_nthwc.shape
    xp = jnp.pad(x_nthwc, ((0, 0), (pt, pt), (ph, ph), (pw, pw), (0, 0)))
    T_out = (T + 2 * pt - kt) // st + 1
    H_out = (H + 2 * ph - kh) // sh + 1
    W_out = (W + 2 * pw - kw) // sw + 1
    slices = []
    for it in range(kt):
        for ih in range(kh):
            for iw in range(kw):
                slices.append(
                    xp[:, it:it + st * T_out:st,
                       ih:ih + sh * H_out:sh,
                       iw:iw + sw * W_out:sw, :])
    # feature order: (kt, kh, kw, C_in)
    patches = jnp.concatenate(slices, axis=-1)
    return patches, (T_out, H_out, W_out)


def _round_up(a, b):
    return ((a + b - 1) // b) * b


@functools.partial(jax.jit, static_argnames=("stride", "padding", "eps", "tm"))
def spatio_temporal_conv(x_ncdhw, weight_oidhw, gamma, beta, *,
                         stride=(1, 1, 1), padding=(0, 0, 0),
                         eps=1e-5, tm=1024):
    Cout, Cin, kt, kh, kw = weight_oidhw.shape
    assert LANE % Cout == 0, "lane-dense packing assumes Cout divides 128"
    pack = LANE // Cout                       # rows folded onto the lane axis
    assert pack & (pack - 1) == 0, "roll reduction assumes power-of-two pack"

    # bf16 inputs for the matmul stream (accumulation stays f32 in-kernel).
    x = jnp.transpose(x_ncdhw, (0, 2, 3, 4, 1)).astype(jnp.bfloat16)   # NTHWC
    patches, (T_out, H_out, W_out) = _im2col(x, (kt, kh, kw), stride, padding)

    N = x.shape[0]
    M = N * T_out * H_out * W_out
    K = kt * kh * kw * Cin

    # Tile size in original conv-output rows; keep tp = tm/pack a multiple of 8.
    tm = max(pack * 8, min(tm, _round_up(M, pack * 8)))
    tm = _round_up(tm, pack * 8)
    num_tiles = pl.cdiv(M, tm)
    Mp = num_tiles * tm
    tp = tm // pack                            # packed rows per tile

    p2d = patches.reshape(M, K)                # no K padding (full-dim block)
    if Mp != M:
        p2d = jnp.pad(p2d, ((0, Mp - M), (0, 0)))
    p_packed = p2d.reshape(Mp // pack, pack * K)   # free row-major refold

    # Block-diagonal weights: (pack*K, pack*Cout) = kron(I_pack, W), so the
    # matmul emits the lane-dense packed output directly (no in-kernel relayout).
    w2d = jnp.transpose(weight_oidhw, (2, 3, 4, 1, 0)).reshape(K, Cout)
    w_big = jnp.kron(jnp.eye(pack, dtype=jnp.float32),
                     w2d.astype(jnp.float32)).astype(jnp.bfloat16)

    gamma_p = jnp.tile(gamma.astype(jnp.float32), pack).reshape(1, LANE)
    beta_p = jnp.tile(beta.astype(jnp.float32), pack).reshape(1, LANE)

    kernel = functools.partial(_fused_conv_bn_relu_kernel,
                               tp=tp, cout=Cout, pack=pack, m_real=M, eps=eps)

    nt = num_tiles
    # VMEM budget: packed f32 slab Mp/pack x 128 (~131 KiB here), double-buffered
    # bf16 patch tiles (~0.5 MiB) and resident block-diag weights (~0.9 MiB),
    # tiny stats/scale/shift -- well under the scoped default on v5e/v6e/v7x.
    out_packed = pl.pallas_call(
        kernel,
        out_shape=jax.ShapeDtypeStruct((Mp // pack, LANE), jnp.bfloat16),
        grid_spec=pltpu.PrefetchScalarGridSpec(
            num_scalar_prefetch=0,
            grid=(2, nt),                  # phase 0: conv+stats, phase 1: BN+ReLU
            in_specs=[
                # Patches: stream per tile during phase 0; during phase 1 hold the
                # last block index so no new patch DMAs are issued.
                pl.BlockSpec((tp, pack * K),
                             lambda p, i: ((1 - p) * i + p * (nt - 1), 0)),
                pl.BlockSpec((pack * K, LANE), lambda p, i: (0, 0)),  # weights
                pl.BlockSpec((1, LANE), lambda p, i: (0, 0)),         # gamma
                pl.BlockSpec((1, LANE), lambda p, i: (0, 0)),         # beta
            ],
            # Phase 0 parks on output block 0 (never written, never flushed);
            # phase 1 walks the blocks so each BN'd tile streams out to HBM while
            # the next tile's BN compute proceeds.
            out_specs=pl.BlockSpec((tp, LANE), lambda p, i: (p * i, 0)),
            scratch_shapes=[
                pltpu.VMEM((Mp // pack, LANE), jnp.float32),  # packed conv slab
                pltpu.VMEM((1, LANE), jnp.float32),           # (group,ch) sum
                pltpu.VMEM((1, LANE), jnp.float32),           # (group,ch) sum sq
                pltpu.VMEM((1, LANE), jnp.float32),           # BN scale (packed)
                pltpu.VMEM((1, LANE), jnp.float32),           # BN shift (packed)
            ]),
        compiler_params=pltpu.CompilerParams(
            # Carried slab + stats make the whole grid strictly sequential.
            dimension_semantics=("arbitrary", "arbitrary")),
    )(p_packed, w_big, gamma_p, beta_p)

    out = out_packed.reshape(Mp, Cout)[:M]
    out = out.reshape(N, T_out, H_out, W_out, Cout)
    return jnp.transpose(out, (0, 4, 1, 2, 3))    # NCDHW (bf16)


# -------------------------------- reference ----------------------------------

def _reference(x, w, gamma, beta, stride, padding, eps=1e-5):
    y = jax.lax.conv_general_dilated(
        x.astype(jnp.float32), w.astype(jnp.float32),
        window_strides=stride,
        padding=[(p, p) for p in padding],
        dimension_numbers=("NCDHW", "OIDHW", "NCDHW"))
    mean = jnp.mean(y, axis=(0, 2, 3, 4), keepdims=True)
    var = jnp.var(y, axis=(0, 2, 3, 4), keepdims=True)
    g = gamma.reshape(1, -1, 1, 1, 1)
    b = beta.reshape(1, -1, 1, 1, 1)
    y = (y - mean) / jnp.sqrt(var + eps) * g + b
    return jnp.maximum(y, 0.0)


# ----------------------------------- main ------------------------------------

if __name__ == "__main__":
    # SpatioTemporalConv(in_channels=4, out_channels=8, kernel_size=3,
    #                    stride=1, padding=1, bias=False)
    N, Cin, T, H, W = 2, 4, 8, 16, 16
    Cout, k = 8, 3
    stride = (1, 1, 1)
    padding = (1, 1, 1)

    key = jax.random.PRNGKey(0)
    kx, kw_ = jax.random.split(key)
    x = jax.random.normal(kx, (N, Cin, T, H, W), dtype=jnp.float32)
    weight = jax.random.normal(kw_, (Cout, Cin, k, k, k), dtype=jnp.float32) * 0.1
    gamma = jnp.ones((Cout,), jnp.float32)    # nn.BatchNorm3d default weight
    beta = jnp.zeros((Cout,), jnp.float32)    # nn.BatchNorm3d default bias

    out = spatio_temporal_conv(x, weight, gamma, beta,
                               stride=stride, padding=padding)
    out = jax.block_until_ready(out)

    ref = _reference(x, weight, gamma, beta, stride, padding)
    out_f32 = out.astype(jnp.float32)
    assert out.shape == ref.shape, (out.shape, ref.shape)
    assert bool(jnp.all(jnp.isfinite(out_f32)))
    assert jnp.allclose(out_f32, ref, atol=3e-2, rtol=3e-2), float(
        jnp.max(jnp.abs(out_f32 - ref)))

    print("KERNEL_OK")
</pallas_src>

<mosaic_0001>
module attributes {stable_mosaic.version = 11 : i64} {
  func.func @_fused_conv_bn_relu_kernel(%arg0: i32, %arg1: i32, %arg2: memref<64x1728xbf16, #tpu.memory_space<vmem>>, %arg3: memref<1728x128xbf16, #tpu.memory_space<vmem>>, %arg4: memref<1x128xf32, #tpu.memory_space<vmem>>, %arg5: memref<1x128xf32, #tpu.memory_space<vmem>>, %arg6: memref<64x128xbf16, #tpu.memory_space<vmem>>, %arg7: memref<256x128xf32, #tpu.memory_space<vmem>>, %arg8: memref<1x128xf32, #tpu.memory_space<vmem>>, %arg9: memref<1x128xf32, #tpu.memory_space<vmem>>, %arg10: memref<1x128xf32, #tpu.memory_space<vmem>>, %arg11: memref<1x128xf32, #tpu.memory_space<vmem>>) attributes {dimension_semantics = [#tpu.dimension_semantics<arbitrary>, #tpu.dimension_semantics<arbitrary>], iteration_bounds = array<i64: 2, 4>, scalar_prefetch = 0 : i64, scratch_operands = 5 : i64, tpu.core_type = #tpu.core_type<tc>, window_params = [{transform_indices = @transform_0, window_bounds = array<i64: 64, 1728>}, {pipeline_mode = #tpu.pipeline_mode<synchronous>, transform_indices = @transform_1, window_bounds = array<i64: 1728, 128>}, {pipeline_mode = #tpu.pipeline_mode<synchronous>, transform_indices = @transform_2, window_bounds = array<i64: 1, 128>}, {pipeline_mode = #tpu.pipeline_mode<synchronous>, transform_indices = @transform_3, window_bounds = array<i64: 1, 128>}, {transform_indices = @transform_4, window_bounds = array<i64: 64, 128>}]} {
    %c0_i32 = arith.constant 0 : i32
    %0 = arith.cmpi eq, %arg0, %c0_i32 : i32
    %c0_i32_0 = arith.constant 0 : i32
    %1 = arith.cmpi eq, %arg1, %c0_i32_0 : i32
    %2 = arith.andi %0, %1 : i1
    %3 = arith.extui %2 : i1 to i32
    %c0_i32_1 = arith.constant 0 : i32
    %4 = arith.cmpi ne, %3, %c0_i32_1 : i32
    scf.if %4 {
      %cst = arith.constant 0.000000e+00 : f32
      %16 = vector.broadcast %cst : f32 to vector<1x128xf32>
      %c0 = arith.constant 0 : index
      %c0_8 = arith.constant 0 : index
      %17 = vector.load %arg8[%c0, %c0_8] : memref<1x128xf32, #tpu.memory_space<vmem>>, vector<1x128xf32>
      tpu.vector_store %arg8[%c0, %c0_8], %16 {strides = array<i32>} : memref<1x128xf32, #tpu.memory_space<vmem>>, vector<1x128xf32>,
      %cst_9 = arith.constant 0.000000e+00 : f32
      %18 = vector.broadcast %cst_9 : f32 to vector<1x128xf32>
      %c0_10 = arith.constant 0 : index
      %c0_11 = arith.constant 0 : index
      %19 = vector.load %arg9[%c0_10, %c0_11] : memref<1x128xf32, #tpu.memory_space<vmem>>, vector<1x128xf32>
      tpu.vector_store %arg9[%c0_10, %c0_11], %18 {strides = array<i32>} : memref<1x128xf32, #tpu.memory_space<vmem>>, vector<1x128xf32>,
    } else {
    }
    %c0_i32_2 = arith.constant 0 : i32
    %5 = arith.cmpi eq, %arg0, %c0_i32_2 : i32
    %6 = arith.extui %5 : i1 to i32
    %c0_i32_3 = arith.constant 0 : i32
    %7 = arith.cmpi ne, %6, %c0_i32_3 : i32
    scf.if %7 {
      %c0 = arith.constant 0 : index
      %c0_8 = arith.constant 0 : index
      %16 = vector.load %arg2[%c0, %c0_8] : memref<64x1728xbf16, #tpu.memory_space<vmem>>, vector<64x1728xbf16>
      %c0_9 = arith.constant 0 : index
      %c0_10 = arith.constant 0 : index
      %17 = vector.load %arg3[%c0_9, %c0_10] : memref<1728x128xbf16, #tpu.memory_space<vmem>>, vector<1728x128xbf16>
      %cst = arith.constant dense<0.000000e+00> : vector<64x128xf32>
      %18 = tpu.matmul %16, %17, %cst {dimension_numbers = #tpu.dot_dimension_numbers<[1], [0], [0], [1], [0, 0, 1, 1], [], []>} : vector<64x1728xbf16>, vector<1728x128xbf16>, vector<64x128xf32> -> vector<64x128xf32>
      %c64_i32 = arith.constant 64 : i32
      %19 = arith.muli %arg1, %c64_i32 : i32
      %20 = tpu.assume_multiple %19, 64 : i32
      %21 = arith.index_cast %20 : i32 to index
      %c0_11 = arith.constant 0 : index
      %22 = vector.load %arg7[%21, %c0_11] : memref<256x128xf32, #tpu.memory_space<vmem>>, vector<64x128xf32>
      tpu.vector_store %arg7[%21, %c0_11], %18 {strides = array<i32>} : memref<256x128xf32, #tpu.memory_space<vmem>>, vector<64x128xf32>,
      %c0_12 = arith.constant 0 : index
      %c0_13 = arith.constant 0 : index
      %23 = vector.load %arg8[%c0_12, %c0_13] : memref<1x128xf32, #tpu.memory_space<vmem>>, vector<1x128xf32>
      %cst_14 = arith.constant dense<0.000000e+00> : vector<128xf32>
      %24 = vector.multi_reduction <add>, %18, %cst_14 [0] : vector<64x128xf32> to vector<128xf32>
      %25 = vector.shape_cast %24 : vector<128xf32> to vector<1x128xf32>
      %26 = arith.addf %23, %25 : vector<1x128xf32>
      %c0_15 = arith.constant 0 : index
      %c0_16 = arith.constant 0 : index
      %27 = vector.load %arg8[%c0_15, %c0_16] : memref<1x128xf32, #tpu.memory_space<vmem>>, vector<1x128xf32>
      tpu.vector_store %arg8[%c0_15, %c0_16], %26 {strides = array<i32>} : memref<1x128xf32, #tpu.memory_space<vmem>>, vector<1x128xf32>,
      %c0_17 = arith.constant 0 : index
      %c0_18 = arith.constant 0 : index
      %28 = vector.load %arg9[%c0_17, %c0_18] : memref<1x128xf32, #tpu.memory_space<vmem>>, vector<1x128xf32>
      %29 = arith.mulf %18, %18 : vector<64x128xf32>
      %cst_19 = arith.constant dense<0.000000e+00> : vector<128xf32>
      %30 = vector.multi_reduction <add>, %29, %cst_19 [0] : vector<64x128xf32> to vector<128xf32>
      %31 = vector.shape_cast %30 : vector<128xf32> to vector<1x128xf32>
      %32 = arith.addf %28, %31 : vector<1x128xf32>
      %c0_20 = arith.constant 0 : index
      %c0_21 = arith.constant 0 : index
      %33 = vector.load %arg9[%c0_20, %c0_21] : memref<1x128xf32, #tpu.memory_space<vmem>>, vector<1x128xf32>
      tpu.vector_store %arg9[%c0_20, %c0_21], %32 {strides = array<i32>} : memref<1x128xf32, #tpu.memory_space<vmem>>, vector<1x128xf32>,
    } else {
    }
    %c1_i32 = arith.constant 1 : i32
    %8 = arith.cmpi eq, %arg0, %c1_i32 : i32
    %c0_i32_4 = arith.constant 0 : i32
    %9 = arith.cmpi eq, %arg1, %c0_i32_4 : i32
    %10 = arith.andi %8, %9 : i1
    %11 = arith.extui %10 : i1 to i32
    %c0_i32_5 = arith.constant 0 : i32
    %12 = arith.cmpi ne, %11, %c0_i32_5 : i32
    scf.if %12 {
      %c0 = arith.constant 0 : index
      %c0_8 = arith.constant 0 : index
      %16 = vector.load %arg8[%c0, %c0_8] : memref<1x128xf32, #tpu.memory_space<vmem>>, vector<1x128xf32>
      %c0_9 = arith.constant 0 : index
      %c0_10 = arith.constant 0 : index
      %17 = vector.load %arg9[%c0_9, %c0_10] : memref<1x128xf32, #tpu.memory_space<vmem>>, vector<1x128xf32>
      %c8_i32 = arith.constant 8 : i32
      %18 = tpu.dynamic_rotate %16 by %c8_i32 dim 1 : vector<1x128xf32>, i32 -> vector<1x128xf32>
      %19 = arith.addf %16, %18 : vector<1x128xf32>
      %c8_i32_11 = arith.constant 8 : i32
      %20 = tpu.dynamic_rotate %17 by %c8_i32_11 dim 1 : vector<1x128xf32>, i32 -> vector<1x128xf32>
      %21 = arith.addf %17, %20 : vector<1x128xf32>
      %c16_i32 = arith.constant 16 : i32
      %22 = tpu.dynamic_rotate %19 by %c16_i32 dim 1 : vector<1x128xf32>, i32 -> vector<1x128xf32>
      %23 = arith.addf %19, %22 : vector<1x128xf32>
      %c16_i32_12 = arith.constant 16 : i32
      %24 = tpu.dynamic_rotate %21 by %c16_i32_12 dim 1 : vector<1x128xf32>, i32 -> vector<1x128xf32>
      %25 = arith.addf %21, %24 : vector<1x128xf32>
      %c32_i32 = arith.constant 32 : i32
      %26 = tpu.dynamic_rotate %23 by %c32_i32 dim 1 : vector<1x128xf32>, i32 -> vector<1x128xf32>
      %27 = arith.addf %23, %26 : vector<1x128xf32>
      %c32_i32_13 = arith.constant 32 : i32
      %28 = tpu.dynamic_rotate %25 by %c32_i32_13 dim 1 : vector<1x128xf32>, i32 -> vector<1x128xf32>
      %29 = arith.addf %25, %28 : vector<1x128xf32>
      %c64_i32 = arith.constant 64 : i32
      %30 = tpu.dynamic_rotate %27 by %c64_i32 dim 1 : vector<1x128xf32>, i32 -> vector<1x128xf32>
      %31 = arith.addf %27, %30 : vector<1x128xf32>
      %c64_i32_14 = arith.constant 64 : i32
      %32 = tpu.dynamic_rotate %29 by %c64_i32_14 dim 1 : vector<1x128xf32>, i32 -> vector<1x128xf32>
      %33 = arith.addf %29, %32 : vector<1x128xf32>
      %cst = arith.constant 2.44140625E-4 : f32
      %34 = vector.broadcast %cst : f32 to vector<1x128xf32>
      %35 = arith.mulf %31, %34 : vector<1x128xf32>
      %cst_15 = arith.constant 2.44140625E-4 : f32
      %36 = vector.broadcast %cst_15 : f32 to vector<1x128xf32>
      %37 = arith.mulf %33, %36 : vector<1x128xf32>
      %38 = arith.mulf %35, %35 : vector<1x128xf32>
      %39 = arith.subf %37, %38 : vector<1x128xf32>
      %cst_16 = arith.constant 0.000000e+00 : f32
      %40 = vector.broadcast %cst_16 : f32 to vector<1x128xf32>
      %41 = arith.maximumf %39, %40 : vector<1x128xf32>
      %cst_17 = arith.constant 9.99999974E-6 : f32
      %42 = vector.broadcast %cst_17 : f32 to vector<1x128xf32>
      %43 = arith.addf %41, %42 : vector<1x128xf32>
      %44 = math.rsqrt %43 : vector<1x128xf32>
      %c0_18 = arith.constant 0 : index
      %c0_19 = arith.constant 0 : index
      %45 = vector.load %arg4[%c0_18, %c0_19] : memref<1x128xf32, #tpu.memory_space<vmem>>, vector<1x128xf32>
      %46 = arith.mulf %45, %44 : vector<1x128xf32>
      %c0_20 = arith.constant 0 : index
      %c0_21 = arith.constant 0 : index
      %47 = vector.load %arg10[%c0_20, %c0_21] : memref<1x128xf32, #tpu.memory_space<vmem>>, vector<1x128xf32>
      tpu.vector_store %arg10[%c0_20, %c0_21], %46 {strides = array<i32>} : memref<1x128xf32, #tpu.memory_space<vmem>>, vector<1x128xf32>,
      %c0_22 = arith.constant 0 : index
      %c0_23 = arith.constant 0 : index
      %48 = vector.load %arg5[%c0_22, %c0_23] : memref<1x128xf32, #tpu.memory_space<vmem>>, vector<1x128xf32>
      %c0_24 = arith.constant 0 : index
      %c0_25 = arith.constant 0 : index
      %49 = vector.load %arg10[%c0_24, %c0_25] : memref<1x128xf32, #tpu.memory_space<vmem>>, vector<1x128xf32>
      %50 = arith.mulf %35, %49 : vector<1x128xf32>
      %51 = arith.subf %48, %50 : vector<1x128xf32>
      %c0_26 = arith.constant 0 : index
      %c0_27 = arith.constant 0 : index
      %52 = vector.load %arg11[%c0_26, %c0_27] : memref<1x128xf32, #tpu.memory_space<vmem>>, vector<1x128xf32>
      tpu.vector_store %arg11[%c0_26, %c0_27], %51 {strides = array<i32>} : memref<1x128xf32, #tpu.memory_space<vmem>>, vector<1x128xf32>,
    } else {
    }
    %c1_i32_6 = arith.constant 1 : i32
    %13 = arith.cmpi eq, %arg0, %c1_i32_6 : i32
    %14 = arith.extui %13 : i1 to i32
    %c0_i32_7 = arith.constant 0 : i32
    %15 = arith.cmpi ne, %14, %c0_i32_7 : i32
    scf.if %15 {
      %c64_i32 = arith.constant 64 : i32
      %16 = arith.muli %arg1, %c64_i32 : i32
      %17 = tpu.assume_multiple %16, 64 : i32
      %18 = arith.index_cast %17 : i32 to index
      %c0 = arith.constant 0 : index
      %19 = vector.load %arg7[%18, %c0] : memref<256x128xf32, #tpu.memory_space<vmem>>, vector<64x128xf32>
      %c0_8 = arith.constant 0 : index
      %c0_9 = arith.constant 0 : index
      %20 = vector.load %arg10[%c0_8, %c0_9] : memref<1x128xf32, #tpu.memory_space<vmem>>, vector<1x128xf32>
      %21 = vector.broadcast %20 : vector<1x128xf32> to vector<64x128xf32>
      %22 = arith.mulf %19, %21 : vector<64x128xf32>
      %c0_10 = arith.constant 0 : index
      %c0_11 = arith.constant 0 : index
      %23 = vector.load %arg11[%c0_10, %c0_11] : memref<1x128xf32, #tpu.memory_space<vmem>>, vector<1x128xf32>
      %24 = vector.broadcast %23 : vector<1x128xf32> to vector<64x128xf32>
      %25 = arith.addf %22, %24 : vector<64x128xf32>
      %cst = arith.constant 0.000000e+00 : f32
      %26 = vector.broadcast %cst : f32 to vector<64x128xf32>
      %27 = arith.maximumf %25, %26 : vector<64x128xf32>
      %28 = arith.truncf %27 : vector<64x128xf32> to vector<64x128xbf16>
      %c0_12 = arith.constant 0 : index
      %c0_13 = arith.constant 0 : index
      %29 = vector.load %arg6[%c0_12, %c0_13] : memref<64x128xbf16, #tpu.memory_space<vmem>>, vector<64x128xbf16>
      tpu.vector_store %arg6[%c0_12, %c0_13], %28 {strides = array<i32>} : memref<64x128xbf16, #tpu.memory_space<vmem>>, vector<64x128xbf16>,
    } else {
    }
    return
  }
  func.func @transform_0(%arg0: i32, %arg1: i32) -> (i32, i32) {
    %c1_i32 = arith.constant 1 : i32
    %0 = arith.subi %c1_i32, %arg0 : i32
    %1 = arith.muli %0, %arg1 : i32
    %c3_i32 = arith.constant 3 : i32
    %2 = arith.muli %arg0, %c3_i32 : i32
    %3 = arith.addi %1, %2 : i32
    %c0_i32 = arith.constant 0 : i32
    %c0_i32_0 = arith.constant 0 : i32
    return %3, %c0_i32 : i32, i32
  }
  func.func @transform_1(%arg0: i32, %arg1: i32) -> (i32, i32) {
    %c0_i32 = arith.constant 0 : i32
    %c0_i32_0 = arith.constant 0 : i32
    %c0_i32_1 = arith.constant 0 : i32
    return %c0_i32, %c0_i32_0 : i32, i32
  }
  func.func @transform_2(%arg0: i32, %arg1: i32) -> (i32, i32) {
    %c0_i32 = arith.constant 0 : i32
    %c0_i32_0 = arith.constant 0 : i32
    %c0_i32_1 = arith.constant 0 : i32
    return %c0_i32, %c0_i32_0 : i32, i32
  }
  func.func @transform_3(%arg0: i32, %arg1: i32) -> (i32, i32) {
    %c0_i32 = arith.constant 0 : i32
    %c0_i32_0 = arith.constant 0 : i32
    %c0_i32_1 = arith.constant 0 : i32
    return %c0_i32, %c0_i32_0 : i32, i32
  }
  func.func @transform_4(%arg0: i32, %arg1: i32) -> (i32, i32) {
    %0 = arith.muli %arg0, %arg1 : i32
    %c0_i32 = arith.constant 0 : i32
    %c0_i32_0 = arith.constant 0 : i32
    return %0, %c0_i32 : i32, i32
  }
}

</mosaic_0001>

<llo_original>
// kernel: mul.4
$region0: #{mul.4}
  %s0 = inlined_call_operand.vmem [shape: f32[3,3,3,4,8], index: 0, kind: input, shape index: {}]
  %s1 = inlined_call_operand.vmem [shape: f32[108,8], index: 1, kind: output, shape index: {}]
  $region1: #{mul.4} parent=0
    #allocation0 [shape = 'u8[110592]{0}', space=vmem, size = 0x1b000, scoped, tag = 'scoped mem for input reshape']
    %s3 = sshll.u32 1, 4
    %s4 = ssub.s32 %s3, 1
    %s5 = smul.addr 4, 26
    %s6 = scalar_lea.vmem %s0, %s5
    %v7 = vld [vmem:[%s6] sm:%s4]
    %s8 = scalar_lea.vmem [#allocation0], 208
    %9 = vst [vmem:[%s8] sm:%s4] %v7
    %s10 = smul.addr 4, 25
    %s11 = scalar_lea.vmem %s0, %s10
    %v12 = vld [vmem:[%s11] sm:%s4]
    %s13 = scalar_lea.vmem [#allocation0], 200
    %14 = vst [vmem:[%s13] sm:%s4] %v12
    %s15 = smul.addr 4, 24
    %s16 = scalar_lea.vmem %s0, %s15
    %v17 = vld [vmem:[%s16] sm:%s4]
    %s18 = scalar_lea.vmem [#allocation0], 192
    %19 = vst [vmem:[%s18] sm:%s4] %v17
    %s20 = smul.addr 4, 23
    %s21 = scalar_lea.vmem %s0, %s20
    %v22 = vld [vmem:[%s21] sm:%s4]
    %s23 = scalar_lea.vmem [#allocation0], 184
    %24 = vst [vmem:[%s23] sm:%s4] %v22
    %s25 = smul.addr 4, 22
    %s26 = scalar_lea.vmem %s0, %s25
    %v27 = vld [vmem:[%s26] sm:%s4]
    %s28 = scalar_lea.vmem [#allocation0], 176
    %29 = vst [vmem:[%s28] sm:%s4] %v27
    %s30 = smul.addr 4, 21
    %s31 = scalar_lea.vmem %s0, %s30
    %v32 = vld [vmem:[%s31] sm:%s4]
    %s33 = scalar_lea.vmem [#allocation0], 168
    %34 = vst [vmem:[%s33] sm:%s4] %v32
    %s35 = smul.addr 4, 20
    %s36 = scalar_lea.vmem %s0, %s35
    %v37 = vld [vmem:[%s36] sm:%s4]
    %s38 = scalar_lea.vmem [#allocation0], 160
    %39 = vst [vmem:[%s38] sm:%s4] %v37
    %s40 = smul.addr 4, 19
    %s41 = scalar_lea.vmem %s0, %s40
    %v42 = vld [vmem:[%s41] sm:%s4]
    %s43 = scalar_lea.vmem [#allocation0], 152
    %44 = vst [vmem:[%s43] sm:%s4] %v42
    %s45 = smul.addr 4, 18
    %s46 = scalar_lea.vmem %s0, %s45
    %v47 = vld [vmem:[%s46] sm:%s4]
    %s48 = scalar_lea.vmem [#allocation0], 144
    %49 = vst [vmem:[%s48] sm:%s4] %v47
    %s50 = smul.addr 4, 17
    %s51 = scalar_lea.vmem %s0, %s50
    %v52 = vld [vmem:[%s51] sm:%s4]
    %s53 = scalar_lea.vmem [#allocation0], 136
    %54 = vst [vmem:[%s53] sm:%s4] %v52
    %s55 = smul.addr 4, 16
    %s56 = scalar_lea.vmem %s0, %s55
    %v57 = vld [vmem:[%s56] sm:%s4]
    %s58 = scalar_lea.vmem [#allocation0], 128
    %59 = vst [vmem:[%s58] sm:%s4] %v57
    %s60 = smul.addr 4, 15
    %s61 = scalar_lea.vmem %s0, %s60
    %v62 = vld [vmem:[%s61] sm:%s4]
    %s63 = scalar_lea.vmem [#allocation0], 120
    %64 = vst [vmem:[%s63] sm:%s4] %v62
    %s65 = smul.addr 4, 14
    %s66 = scalar_lea.vmem %s0, %s65
    %v67 = vld [vmem:[%s66] sm:%s4]
    %s68 = scalar_lea.vmem [#allocation0], 112
    %69 = vst [vmem:[%s68] sm:%s4] %v67
    %s70 = smul.addr 4, 13
    %s71 = scalar_lea.vmem %s0, %s70
    %v72 = vld [vmem:[%s71] sm:%s4]
    %s73 = scalar_lea.vmem [#allocation0], 104
    %74 = vst [vmem:[%s73] sm:%s4] %v72
    %s75 = smul.addr 4, 12
    %s76 = scalar_lea.vmem %s0, %s75
    %v77 = vld [vmem:[%s76] sm:%s4]
    %s78 = scalar_lea.vmem [#allocation0], 96
    %79 = vst [vmem:[%s78] sm:%s4] %v77
    %s80 = smul.addr 4, 11
    %s81 = scalar_lea.vmem %s0, %s80
    %v82 = vld [vmem:[%s81] sm:%s4]
    %s83 = scalar_lea.vmem [#allocation0], 88
    %84 = vst [vmem:[%s83] sm:%s4] %v82
    %s85 = smul.addr 4, 10
    %s86 = scalar_lea.vmem %s0, %s85
    %v87 = vld [vmem:[%s86] sm:%s4]
    %s88 = scalar_lea.vmem [#allocation0], 80
    %89 = vst [vmem:[%s88] sm:%s4] %v87
    %s90 = smul.addr 4, 9
    %s91 = scalar_lea.vmem %s0, %s90
    %v92 = vld [vmem:[%s91] sm:%s4]
    %s93 = scalar_lea.vmem [#allocation0], 72
    %94 = vst [vmem:[%s93] sm:%s4] %v92
    %s95 = smul.addr 4, 8
    %s96 = scalar_lea.vmem %s0, %s95
    %v97 = vld [vmem:[%s96] sm:%s4]
    %s98 = scalar_lea.vmem [#allocation0], 64
    %99 = vst [vmem:[%s98] sm:%s4] %v97
    %s100 = smul.addr 4, 7
    %s101 = scalar_lea.vmem %s0, %s100
    %v102 = vld [vmem:[%s101] sm:%s4]
    %s103 = scalar_lea.vmem [#allocation0], 56
    %104 = vst [vmem:[%s103] sm:%s4] %v102
    %s105 = smul.addr 4, 6
    %s106 = scalar_lea.vmem %s0, %s105
    %v107 = vld [vmem:[%s106] sm:%s4]
    %s108 = scalar_lea.vmem [#allocation0], 48
    %109 = vst [vmem:[%s108] sm:%s4] %v107
    %s110 = smul.addr 4, 5
    %s111 = scalar_lea.vmem %s0, %s110
    %v112 = vld [vmem:[%s111] sm:%s4]
    %s113 = scalar_lea.vmem [#allocation0], 40
    %114 = vst [vmem:[%s113] sm:%s4] %v112
    %s115 = smul.addr 4, 4
    %s116 = scalar_lea.vmem %s0, %s115
    %v117 = vld [vmem:[%s116] sm:%s4]
    %s118 = scalar_lea.vmem [#allocation0], 32
    %119 = vst [vmem:[%s118] sm:%s4] %v117
    %s120 = smul.addr 4, 3
    %s121 = scalar_lea.vmem %s0, %s120
    %v122 = vld [vmem:[%s121] sm:%s4]
    %s123 = scalar_lea.vmem [#allocation0], 24
    %124 = vst [vmem:[%s123] sm:%s4] %v122
    %s125 = smul.addr 4, 2
    %s126 = scalar_lea.vmem %s0, %s125
    %v127 = vld [vmem:[%s126] sm:%s4]
    %s128 = scalar_lea.vmem [#allocation0], 16
    %129 = vst [vmem:[%s128] sm:%s4] %v127
    %s130 = scalar_lea.vmem %s0, 4
    %v131 = vld [vmem:[%s130] sm:%s4]
    %s132 = scalar_lea.vmem [#allocation0], 8
    %133 = vst [vmem:[%s132] sm:%s4] %v131
    %v134 = vld [vmem:[%s0] sm:%s4]
    %135 = vst [vmem:[#allocation0] sm:%s4] %v134
    %v136 = vld [vmem:[#allocation0] sm:$0xf]
    %vm137 = vcmask 64512
    %138 = vst.msk [vmem:[%s1] sm:$0xf] %vm137, %v136
    %s139 = scalar_lea.vmem [#allocation0], 8
    %v140 = vld [vmem:[%s139] sm:$0xf]
    %vm141 = vcmask 64512
    %s142 = scalar_lea.vmem %s1, 4
    %143 = vst.msk [vmem:[%s142] sm:$0xf] %vm141, %v140
    %s144 = scalar_lea.vmem [#allocation0], 16
    %v145 = vld [vmem:[%s144] sm:$0xf]
    %vm146 = vcmask 64512
    %s147 = scalar_lea.vmem %s1, 8
    %148 = vst.msk [vmem:[%s147] sm:$0xf] %vm146, %v145
    %s149 = scalar_lea.vmem [#allocation0], 24
    %v150 = vld [vmem:[%s149] sm:$0xf]
    %vm151 = vcmask 64512
    %s152 = scalar_lea.vmem %s1, 12
    %153 = vst.msk [vmem:[%s152] sm:$0xf] %vm151, %v150
    %s154 = scalar_lea.vmem [#allocation0], 32
    %v155 = vld [vmem:[%s154] sm:$0xf]
    %vm156 = vcmask 64512
    %s157 = scalar_lea.vmem %s1, 16
    %158 = vst.msk [vmem:[%s157] sm:$0xf] %vm156, %v155
    %s159 = scalar_lea.vmem [#allocation0], 40
    %v160 = vld [vmem:[%s159] sm:$0xf]
    %vm161 = vcmask 64512
    %s162 = scalar_lea.vmem %s1, 20
    %163 = vst.msk [vmem:[%s162] sm:$0xf] %vm161, %v160
    %s164 = scalar_lea.vmem [#allocation0], 48
    %v165 = vld [vmem:[%s164] sm:$0xf]
    %vm166 = vcmask 64512
    %s167 = scalar_lea.vmem %s1, 24
    %168 = vst.msk [vmem:[%s167] sm:$0xf] %vm166, %v165
    %s169 = scalar_lea.vmem [#allocation0], 56
    %v170 = vld [vmem:[%s169] sm:$0xf]
    %vm171 = vcmask 64512
    %s172 = scalar_lea.vmem %s1, 28
    %173 = vst.msk [vmem:[%s172] sm:$0xf] %vm171, %v170
    %s174 = scalar_lea.vmem [#allocation0], 64
    %v175 = vld [vmem:[%s174] sm:$0xf]
    %vm176 = vcmask 64512
    %s177 = scalar_lea.vmem %s1, 32
    %178 = vst.msk [vmem:[%s177] sm:$0xf] %vm176, %v175
    %s179 = scalar_lea.vmem [#allocation0], 72
    %v180 = vld [vmem:[%s179] sm:$0xf]
    %vm181 = vcmask 64512
    %s182 = scalar_lea.vmem %s1, 36
    %183 = vst.msk [vmem:[%s182] sm:$0xf] %vm181, %v180
    %s184 = scalar_lea.vmem [#allocation0], 80
    %v185 = vld [vmem:[%s184] sm:$0xf]
    %vm186 = vcmask 64512
    %s187 = scalar_lea.vmem %s1, 40
    %188 = vst.msk [vmem:[%s187] sm:$0xf] %vm186, %v185
    %s189 = scalar_lea.vmem [#allocation0], 88
    %v190 = vld [vmem:[%s189] sm:$0xf]
    %vm191 = vcmask 64512
    %s192 = scalar_lea.vmem %s1, 44
    %193 = vst.msk [vmem:[%s192] sm:$0xf] %vm191, %v190
    %s194 = scalar_lea.vmem [#allocation0], 96
    %v195 = vld [vmem:[%s194] sm:$0xf]
    %vm196 = vcmask 64512
    %s197 = scalar_lea.vmem %s1, 48
    %198 = vst.msk [vmem:[%s197] sm:$0xf] %vm196, %v195
    %s199 = scalar_lea.vmem [#allocation0], 104
    %v200 = vld [vmem:[%s199] sm:$0xf]
    %vm201 = vcmask 64512
    %s202 = scalar_lea.vmem %s1, 52
    %203 = vst.msk [vmem:[%s202] sm:$0xf] %vm201, %v200
    %s204 = scalar_lea.vmem [#allocation0], 112
    %v205 = vld [vmem:[%s204] sm:$0xf]
    %vm206 = vcmask 64512
    %s207 = scalar_lea.vmem %s1, 56
    %208 = vst.msk [vmem:[%s207] sm:$0xf] %vm206, %v205
    %s209 = scalar_lea.vmem [#allocation0], 120
    %v210 = vld [vmem:[%s209] sm:$0xf]
    %vm211 = vcmask 64512
    %s212 = scalar_lea.vmem %s1, 60
    %213 = vst.msk [vmem:[%s212] sm:$0xf] %vm211, %v210
    %s214 = scalar_lea.vmem [#allocation0], 128
    %v215 = vld [vmem:[%s214] sm:$0xf]
    %vm216 = vcmask 64512
    %s217 = scalar_lea.vmem %s1, 64
    %218 = vst.msk [vmem:[%s217] sm:$0xf] %vm216, %v215
    %s219 = scalar_lea.vmem [#allocation0], 136
    %v220 = vld [vmem:[%s219] sm:$0xf]
    %vm221 = vcmask 64512
    %s222 = scalar_lea.vmem %s1, 68
    %223 = vst.msk [vmem:[%s222] sm:$0xf] %vm221, %v220
    %s224 = scalar_lea.vmem [#allocation0], 144
    %v225 = vld [vmem:[%s224] sm:$0xf]
    %vm226 = vcmask 64512
    %s227 = scalar_lea.vmem %s1, 72
    %228 = vst.msk [vmem:[%s227] sm:$0xf] %vm226, %v225
    %s229 = scalar_lea.vmem [#allocation0], 152
    %v230 = vld [vmem:[%s229] sm:$0xf]
    %vm231 = vcmask 64512
    %s232 = scalar_lea.vmem %s1, 76
    %233 = vst.msk [vmem:[%s232] sm:$0xf] %vm231, %v230
    %s234 = scalar_lea.vmem [#allocation0], 160
    %v235 = vld [vmem:[%s234] sm:$0xf]
    %vm236 = vcmask 64512
    %s237 = scalar_lea.vmem %s1, 80
    %238 = vst.msk [vmem:[%s237] sm:$0xf] %vm236, %v235
    %s239 = scalar_lea.vmem [#allocation0], 168
    %v240 = vld [vmem:[%s239] sm:$0xf]
    %vm241 = vcmask 64512
    %s242 = scalar_lea.vmem %s1, 84
    %243 = vst.msk [vmem:[%s242] sm:$0xf] %vm241, %v240
    %s244 = scalar_lea.vmem [#allocation0], 176
    %v245 = vld [vmem:[%s244] sm:$0xf]
    %vm246 = vcmask 64512
    %s247 = scalar_lea.vmem %s1, 88
    %248 = vst.msk [vmem:[%s247] sm:$0xf] %vm246, %v245
    %s249 = scalar_lea.vmem [#allocation0], 184
    %v250 = vld [vmem:[%s249] sm:$0xf]
    %vm251 = vcmask 64512
    %s252 = scalar_lea.vmem %s1, 92
    %253 = vst.msk [vmem:[%s252] sm:$0xf] %vm251, %v250
    %s254 = scalar_lea.vmem [#allocation0], 192
    %v255 = vld [vmem:[%s254] sm:$0xf]
    %vm256 = vcmask 64512
    %s257 = scalar_lea.vmem %s1, 96
    %258 = vst.msk [vmem:[%s257] sm:$0xf] %vm256, %v255
    %s259 = scalar_lea.vmem [#allocation0], 200
    %v260 = vld [vmem:[%s259] sm:$0xf]
    %vm261 = vcmask 64512
    %s262 = scalar_lea.vmem %s1, 100
    %263 = vst.msk [vmem:[%s262] sm:$0xf] %vm261, %v260
    %s264 = scalar_lea.vmem [#allocation0], 208
    %v265 = vld [vmem:[%s264] sm:$0xf]
    %vm266 = vcmask 64512
    %s267 = scalar_lea.vmem %s1, 104
    %268 = vst.msk [vmem:[%s267] sm:$0xf] %vm266, %v265

// kernel: tile.13
$region0: #{tile.13}
  #allocation0 [shape = 's32[1]{0}', space=sflag, size = 0x4, scoped, tag = 'scoped memory for tile.13']
  %s0 = inlined_call_operand.vmem [shape: f32[8], index: 0, kind: input, shape index: {}]
  %s1 = inlined_call_operand.vmem [shape: f32[16,8], index: 1, kind: output, shape index: {}]
  // Predicated region
  $region2: #{tile.13} parent=0 // pred_check
    _
  $region3: #{tile.13} parent=0 // pred_check_branch
    %3 = sbr.rel (0) target = $region5
  $region4: #{tile.13} parent=0 // pred_region
    _
  $region5: #{tile.13} parent=0 // pred_fallthru
    _
  %v4 = vld [vmem:[%s0] ss:$0 sm:$0xff]
  %5 = vst [vmem:[%s1] sm:$0xff] %v4
  %s6 = scalar_lea.vmem %s1, 8
  %7 = vst [vmem:[%s6] sm:$0xff] %v4

// kernel: tile.14
$region0: #{tile.14}
  %s0 = inlined_call_operand.vmem [shape: f32[16,8], index: 0, kind: input, shape index: {}]
  %s1 = inlined_call_operand.vmem [shape: f32[1,128], index: 1, kind: output, shape index: {}]
  $region1: #{tile.14} parent=0
    #allocation0 [shape = 'u8[4096]{0}', space=vmem, size = 0x1000, scoped, tag = 'scoped mem for output reshape']
    %v2 = vld [vmem:[%s0] sm:$0x1]
    %vm3 = vcmask 64512
    %4 = vst.msk [vmem:[#allocation0] sm:$0x1] %vm3, %v2
    %s5 = scalar_lea.vmem %s0, 15
    %v6 = vld [vmem:[%s5] sm:$0x1]
    %7 = vrot.lane.b32.xlu0 %v6, 120
    %v8 = vpop.permute.xlu0 %7
    %vm9 = vcmask 1048512
    %10 = vst.msk [vmem:[#allocation0] sm:$0x1] %vm9, %v8
    %s11 = scalar_lea.vmem %s0, 14
    %v12 = vld [vmem:[%s11] sm:$0x1]
    %13 = vrot.lane.b32.xlu0 %v12, 112
    %v14 = vpop.permute.xlu0 %13
    %vm15 = vcmask 982912
    %16 = vst.msk [vmem:[#allocation0] sm:$0x1] %vm15, %v14
    %s17 = scalar_lea.vmem %s0, 13
    %v18 = vld [vmem:[%s17] sm:$0x1]
    %19 = vrot.lane.b32.xlu0 %v18, 104
    %v20 = vpop.permute.xlu0 %19
    %vm21 = vcmask 917312
    %22 = vst.msk [vmem:[#allocation0] sm:$0x1] %vm21, %v20
    %s23 = scalar_lea.vmem %s0, 12
    %v24 = vld [vmem:[%s23] sm:$0x1]
    %25 = vrot.lane.b32.xlu0 %v24, 96
    %v26 = vpop.permute.xlu0 %25
    %vm27 = vcmask 851712
    %28 = vst.msk [vmem:[#allocation0] sm:$0x1] %vm27, %v26
    %s29 = scalar_lea.vmem %s0, 11
    %v30 = vld [vmem:[%s29] sm:$0x1]
    %31 = vrot.lane.b32.xlu0 %v30, 88
    %v32 = vpop.permute.xlu0 %31
    %vm33 = vcmask 786112
    %34 = vst.msk [vmem:[#allocation0] sm:$0x1] %vm33, %v32
    %s35 = scalar_lea.vmem %s0, 10
    %v36 = vld [vmem:[%s35] sm:$0x1]
    %37 = vrot.lane.b32.xlu0 %v36, 80
    %v38 = vpop.permute.xlu0 %37
    %vm39 = vcmask 720512
    %40 = vst.msk [vmem:[#allocation0] sm:$0x1] %vm39, %v38
    %s41 = scalar_lea.vmem %s0, 9
    %v42 = vld [vmem:[%s41] sm:$0x1]
    %43 = vrot.lane.b32.xlu0 %v42, 72
    %v44 = vpop.permute.xlu0 %43
    %vm45 = vcmask 654912
    %46 = vst.msk [vmem:[#allocation0] sm:$0x1] %vm45, %v44
    %s47 = scalar_lea.vmem %s0, 8
    %v48 = vld [vmem:[%s47] sm:$0x1]
    %49 = vrot.lane.b32.xlu0 %v48, 64
    %v50 = vpop.permute.xlu0 %49
    %vm51 = vcmask 589312
    %52 = vst.msk [vmem:[#allocation0] sm:$0x1] %vm51, %v50
    %s53 = scalar_lea.vmem %s0, 7
    %v54 = vld [vmem:[%s53] sm:$0x1]
    %55 = vrot.lane.b32.xlu0 %v54, 56
    %v56 = vpop.permute.xlu0 %55
    %vm57 = vcmask 523712
    %58 = vst.msk [vmem:[#allocation0] sm:$0x1] %vm57, %v56
    %s59 = scalar_lea.vmem %s0, 6
    %v60 = vld [vmem:[%s59] sm:$0x1]
    %61 = vrot.lane.b32.xlu0 %v60, 48
    %v62 = vpop.permute.xlu0 %61
    %vm63 = vcmask 458112
    %64 = vst.msk [vmem:[#allocation0] sm:$0x1] %vm63, %v62
    %s65 = scalar_lea.vmem %s0, 5
    %v66 = vld [vmem:[%s65] sm:$0x1]
    %67 = vrot.lane.b32.xlu0 %v66, 40
    %v68 = vpop.permute.xlu0 %67
    %vm69 = vcmask 392512
    %70 = vst.msk [vmem:[#allocation0] sm:$0x1] %vm69, %v68
    %s71 = scalar_lea.vmem %s0, 4
    %v72 = vld [vmem:[%s71] sm:$0x1]
    %73 = vrot.lane.b32.xlu0 %v72, 32
    %v74 = vpop.permute.xlu0 %73
    %vm75 = vcmask 326912
    %76 = vst.msk [vmem:[#allocation0] sm:$0x1] %vm75, %v74
    %s77 = scalar_lea.vmem %s0, 3
    %v78 = vld [vmem:[%s77] sm:$0x1]
    %79 = vrot.lane.b32.xlu0 %v78, 24
    %v80 = vpop.permute.xlu0 %79
    %vm81 = vcmask 261312
    %82 = vst.msk [vmem:[#allocation0] sm:$0x1] %vm81, %v80
    %s83 = scalar_lea.vmem %s0, 2
    %v84 = vld [vmem:[%s83] sm:$0x1]
    %85 = vrot.lane.b32.xlu0 %v84, 16
    %v86 = vpop.permute.xlu0 %85
    %vm87 = vcmask 195712
    %88 = vst.msk [vmem:[#allocation0] sm:$0x1] %vm87, %v86
    %s89 = scalar_lea.vmem %s0, 1
    %v90 = vld [vmem:[%s89] sm:$0x1]
    %91 = vrot.lane.b32.xlu0 %v90, 8
    %v92 = vpop.permute.xlu0 %91
    %vm93 = vcmask 130112
    %94 = vst.msk [vmem:[#allocation0] sm:$0x1] %vm93, %v92
    %s96 = sshll.u32 1, 1
    %s97 = ssub.s32 %s96, 1
    %v99 = vld [vmem:[#allocation0] sm:%s97]
    %s100 = sshll.u32 1, 1
    %s101 = ssub.s32 %s100, 1
    %102 = vst [vmem:[%s1] sm:%s101] %v99

// kernel: spatio_temporal_conv.1
$region0: #{spatio_temporal_conv.1}
  #allocation0 [shape = 'u32[]', space=smem, size = 0x4, offset = 0x4, fixed_abs, tag = 'smem constant byte address 0x4 - core index']
  #allocation1 [shape = 'u32[144,128]{1,0:T(1,128)}', space=vmem, size = 0x12000, scoped, tag = 'internal scratch']
  #allocation2 [shape = 'f32[256,128]{1,0:T(8,128)}', space=vmem, size = 0x20000, scoped, tag = 'scratch operand']
  #allocation3 [shape = 'f32[1,128]{1,0:T(1,128)}', space=vmem, size = 0x200, scoped, tag = 'scratch operand']
  #allocation4 [shape = 'f32[1,128]{1,0:T(1,128)}', space=vmem, size = 0x200, scoped, tag = 'scratch operand']
  #allocation5 [shape = 'f32[1,128]{1,0:T(1,128)}', space=vmem, size = 0x200, scoped, tag = 'scratch operand']
  #allocation6 [shape = 'f32[1,128]{1,0:T(1,128)}', space=vmem, size = 0x200, scoped, tag = 'scratch operand']
  %s0 = inlined_call_operand.vmem [shape: bf16[256,1728], index: 0, kind: input, shape index: {}]
  %s1 = inlined_call_operand.vmem [shape: bf16[1728,128], index: 1, kind: input, shape index: {}]
  %s2 = inlined_call_operand.vmem [shape: f32[1,128], index: 2, kind: input, shape index: {}]
  %s3 = inlined_call_operand.vmem [shape: f32[1,128], index: 3, kind: input, shape index: {}]
  %s4 = inlined_call_operand.vmem [shape: bf16[256,128], index: 4, kind: output, shape index: {}]
  %s5 = sld [smem:[#allocation0]]
  $region65: #{spatio_temporal_conv.1} parent=0
    _
  %s7 = ssub.s32 1, %s5
  %s8 = scalar_select 0, %s7, %s5
  loop: start=0, step=1, limit=10
  $region2: #{spatio_temporal_conv.1} parent=0 // loop_pre_header
    _
  $region3: #{spatio_temporal_conv.1} parent=0 // loop_header
    %s10 = sphi 0, %s14
    %p11 = scmp.ge.s32.totalorder %s10, 10
    %s17 = sphi 0, %s29
    %s18 = sphi 0, %s25
    %s19 = sphi 0, %s17
    %s20 = sphi 0, %s18
    %s21 = sphi 0, %s19
    %s22 = sphi 0, %s20
    %s40 = sphi 0, %s42
    %s43 = sphi 0, %s40
    %s44 = sphi 0, %s43
    %s60 = sphi 0, %s44
    %s64 = sphi 0, %s64
    %s66 = sphi 0, %s64
    %s67 = sphi 0, %s66
    %s81 = sphi 0, %s67
    %s85 = sphi 0, %s85
    %s87 = sphi 0, %s85
    %s88 = sphi 0, %s87
    %s102 = sphi 0, %s88
    %s106 = sphi 0, %s106
    %s108 = sphi 0, %s106
    %s109 = sphi 0, %s108
    %s123 = sphi 0, %s109
    %s131 = sphi 0, %s133
    %s134 = sphi 0, %s131
    %s135 = sphi 0, %s134
    %s151 = sphi 0, %s135
  $region4: #{spatio_temporal_conv.1} parent=0 // loop_header_branch
    %13 = sbr.rel (%p11) target = $region8
  $region5: #{spatio_temporal_conv.1} parent=0 // loop_body
    %s15 = ssub.s32 %s10, 1
    %s16 = ssub.s32 %s10, 2
    %s23 = sadd.s32 1, %s18
    %p24 = scmp.ge.s32.totalorder %s23, 4
    %s25 = scalar_select %p24, 0, %s23
    %s26 = sadd.s32 1, %s17
    %s27 = scalar_select %p24, %s26, %s17
    %p28 = scmp.ge.s32.totalorder %s27, 2
    %s29 = scalar_select %p28, 0, %s27
    %s30 = ssub.s32 1, %s17
    %s31 = smul.u32 %s30, %s18
    %s32 = smul.u32 %s17, 3
    %s33 = sadd.s32 %s31, %s32
    %s34 = ssub.s32 1, %s29
    %s35 = smul.u32 %s34, %s25
    %s36 = smul.u32 %s29, 3
    %s37 = sadd.s32 %s35, %s36
    %s38 = ssub.s32 %s33, %s37
    %p39 = scmp.eq.s32.totalorder %s38, 0
    %s41 = sadd.s32 %s40, 1
    %s42 = scalar_select %p39, %s40, %s41
    %p45 = pneg %p39
    %p46 = scmp.eq.s32.totalorder %s10, 7
    %p47 = por %p45, %p46
    %p48 = scmp.ne.s32.totalorder %s40, %s43
    %p49 = scmp.eq.s32.totalorder %s10, 0
    %p50 = por %p48, %p49
    %p51 = scmp.ne.s32.totalorder %s40, %s43
    %p52 = scmp.eq.s32.totalorder %s15, 7
    %p53 = por %p51, %p52
    %p54 = scmp.ne.s32.totalorder %s43, %s44
    %p55 = scmp.eq.s32.totalorder %s15, 0
    %p56 = por %p54, %p55
    %p57 = scmp.ne.s32.totalorder %s43, %s44
    %p58 = scmp.eq.s32.totalorder %s16, 7
    %p59 = por %p57, %p58
    %p61 = scmp.ne.s32.totalorder %s44, %s60
    %p62 = scmp.eq.s32.totalorder %s16, 0
    %p63 = por %p61, %p62
    %s65 = sadd.s32 %s64, 1
    %p68 = scmp.eq.s32.totalorder %s10, 7
    %p69 = scmp.ne.s32.totalorder %s64, %s66
    %p70 = scmp.eq.s32.totalorder %s10, 0
    %p71 = por %p69, %p70
    %p72 = scmp.ne.s32.totalorder %s64, %s66
    %p73 = scmp.eq.s32.totalorder %s15, 7
    %p74 = por %p72, %p73
    %p75 = scmp.ne.s32.totalorder %s66, %s67
    %p76 = scmp.eq.s32.totalorder %s15, 0
    %p77 = por %p75, %p76
    %p78 = scmp.ne.s32.totalorder %s66, %s67
    %p79 = scmp.eq.s32.totalorder %s16, 7
    %p80 = por %p78, %p79
    %p82 = scmp.ne.s32.totalorder %s67, %s81
    %p83 = scmp.eq.s32.totalorder %s16, 0
    %p84 = por %p82, %p83
    %s86 = sadd.s32 %s85, 1
    %p89 = scmp.eq.s32.totalorder %s10, 7
    %p90 = scmp.ne.s32.totalorder %s85, %s87
    %p91 = scmp.eq.s32.totalorder %s10, 0
    %p92 = por %p90, %p91
    %p93 = scmp.ne.s32.totalorder %s85, %s87
    %p94 = scmp.eq.s32.totalorder %s15, 7
    %p95 = por %p93, %p94
    %p96 = scmp.ne.s32.totalorder %s87, %s88
    %p97 = scmp.eq.s32.totalorder %s15, 0
    %p98 = por %p96, %p97
    %p99 = scmp.ne.s32.totalorder %s87, %s88
    %p100 = scmp.eq.s32.totalorder %s16, 7
    %p101 = por %p99, %p100
    %p103 = scmp.ne.s32.totalorder %s88, %s102
    %p104 = scmp.eq.s32.totalorder %s16, 0
    %p105 = por %p103, %p104
    %s107 = sadd.s32 %s106, 1
    %p110 = scmp.eq.s32.totalorder %s10, 7
    %p111 = scmp.ne.s32.totalorder %s106, %s108
    %p112 = scmp.eq.s32.totalorder %s10, 0
    %p113 = por %p111, %p112
    %p114 = scmp.ne.s32.totalorder %s106, %s108
    %p115 = scmp.eq.s32.totalorder %s15, 7
    %p116 = por %p114, %p115
    %p117 = scmp.ne.s32.totalorder %s108, %s109
    %p118 = scmp.eq.s32.totalorder %s15, 0
    %p119 = por %p117, %p118
    %p120 = scmp.ne.s32.totalorder %s108, %s109
    %p121 = scmp.eq.s32.totalorder %s16, 7
    %p122 = por %p120, %p121
    %p124 = scmp.ne.s32.totalorder %s109, %s123
    %p125 = scmp.eq.s32.totalorder %s16, 0
    %p126 = por %p124, %p125
    %s127 = smul.u32 %s17, %s18
    %s128 = smul.u32 %s29, %s25
    %s129 = ssub.s32 %s127, %s128
    %p130 = scmp.eq.s32.totalorder %s129, 0
    %s132 = sadd.s32 %s131, 1
    %s133 = scalar_select %p130, %s131, %s132
    %p136 = pneg %p130
    %p137 = scmp.eq.s32.totalorder %s10, 7
    %p138 = por %p136, %p137
    %p139 = scmp.ne.s32.totalorder %s131, %s134
    %p140 = scmp.eq.s32.totalorder %s10, 0
    %p141 = por %p139, %p140
    %p142 = scmp.ne.s32.totalorder %s131, %s134
    %p143 = scmp.eq.s32.totalorder %s15, 7
    %p144 = por %p142, %p143
    %p145 = scmp.ne.s32.totalorder %s134, %s135
    %p146 = scmp.eq.s32.totalorder %s15, 0
    %p147 = por %p145, %p146
    %p148 = scmp.ne.s32.totalorder %s134, %s135
    %p149 = scmp.eq.s32.totalorder %s16, 7
    %p150 = por %p148, %p149
    %p152 = scmp.ne.s32.totalorder %s135, %s151
    %p153 = scmp.eq.s32.totalorder %s16, 0
    %p154 = por %p152, %p153
    %p155 = scmp.le.s32.totalorder 1, %s10
    %p156 = scmp.lt.s32.totalorder %s10, 9
    %p157 = pnand %p155, %p156
    %p158 = pneg %p157
    // Predicated region
    $region9: #{spatio_temporal_conv.1} parent=5 // pred_check
      _
    $region10: #{spatio_temporal_conv.1} parent=5 // pred_check_branch
      %160 = sbr.rel (%p157) target = $region12
    $region11: #{spatio_temporal_conv.1} parent=5 // pred_region
      %s161 = ssub.s32 %s10, 1
      // Predicated region
      $region13: #{spatio_temporal_conv.1} parent=11 // pred_check
        %p162 = pneg %p77
      $region14: #{spatio_temporal_conv.1} parent=11 // pred_check_branch
        %164 = sbr.rel (%p162) target = $region16
      $region15: #{spatio_temporal_conv.1} parent=11 // pred_region
        _
      $region16: #{spatio_temporal_conv.1} parent=11 // pred_fallthru
        _
      // Predicated region
      $region17: #{spatio_temporal_conv.1} parent=11 // pred_check
        %p165 = pneg %p98
      $region18: #{spatio_temporal_conv.1} parent=11 // pred_check_branch
        %167 = sbr.rel (%p165) target = $region20
      $region19: #{spatio_temporal_conv.1} parent=11 // pred_region
        _
      $region20: #{spatio_temporal_conv.1} parent=11 // pred_fallthru
        _
      // Predicated region
      $region21: #{spatio_temporal_conv.1} parent=11 // pred_check
        %p168 = pneg %p119
      $region22: #{spatio_temporal_conv.1} parent=11 // pred_check_branch
        %170 = sbr.rel (%p168) target = $region24
      $region23: #{spatio_temporal_conv.1} parent=11 // pred_region
        _
      $region24: #{spatio_temporal_conv.1} parent=11 // pred_fallthru
        _
    $region12: #{spatio_temporal_conv.1} parent=5 // pred_fallthru
      _
    %p171 = scmp.lt.s32.totalorder %s10, 8
    // Predicated region
    $region25: #{spatio_temporal_conv.1} parent=5 // pred_check
      %p172 = pneg %p171
    $region26: #{spatio_temporal_conv.1} parent=5 // pred_check_branch
      %174 = sbr.rel (%p172) target = $region28
    $region27: #{spatio_temporal_conv.1} parent=5 // pred_region
      // Predicated region
      $region29: #{spatio_temporal_conv.1} parent=27 // pred_check
        %p175 = pneg %p50
      $region30: #{spatio_temporal_conv.1} parent=27 // pred_check_branch
        %177 = sbr.rel (%p175) target = $region32
      $region31: #{spatio_temporal_conv.1} parent=27 // pred_region
        %s178 = ssub.s32 1, %s17
        %s179 = smul.u32 %s178, %s18
        %s180 = smul.u32 %s17, 3
        %s181 = sadd.s32 %s179, %s180
        %s182 = smul.u32 8, %s181
        %p183 = scmp.lt.s32.totalorder %s182, 31
        %s184 = scalar_select %p183, %s182, 31
        %s185 = smul.addr %s184, 14
        %s186 = smul.addr %s185, 4
        %s187 = scalar_lea.vmem %s0, %s186
        %s188 = ssub.s32 1, %s17
        %s189 = smul.u32 %s188, %s18
        %s190 = smul.u32 %s17, 3
        %s191 = sadd.s32 %s189, %s190
        %s192 = smul.u32 8, %s191
      $region32: #{spatio_temporal_conv.1} parent=27 // pred_fallthru
        _
    $region28: #{spatio_temporal_conv.1} parent=5 // pred_fallthru
      _
    %p193 = scmp.le.s32.totalorder 1, %s10
    %p194 = scmp.lt.s32.totalorder %s10, 9
    %p195 = pnand %p193, %p194
    %p196 = pneg %p195
    // Predicated region
    $region33: #{spatio_temporal_conv.1} parent=5 // pred_check
      _
    $region34: #{spatio_temporal_conv.1} parent=5 // pred_check_branch
      %198 = sbr.rel (%p195) target = $region36
    $region35: #{spatio_temporal_conv.1} parent=5 // pred_region
      %s199 = ssub.s32 %s10, 1
      %s200 = ssub.s32 1, %s19
      %s201 = smul.u32 %s200, %s20
      %s202 = smul.u32 %s19, 3
      %s203 = sadd.s32 %s201, %s202
      %s204 = smul.u32 8, %s203
      %p205 = scmp.lt.s32.totalorder %s204, 31
      %s206 = scalar_select %p205, %s204, 31
      %s207 = smul.addr %s206, 14
      %s208 = smul.addr %s207, 4
      %s209 = scalar_lea.vmem %s0, %s208
      %p210 = pneg %p56
      %p211 = pneg %p53
      %p212 = pneg %p77
      %p213 = pneg %p74
      %p214 = pneg %p98
      %p215 = pneg %p95
      %p216 = pneg %p119
      %p217 = pneg %p116
      %p218 = pneg %p147
      %p219 = pneg %p144
      %s220 = smul.u32 %s19, %s20
      %s221 = smul.u32 8, %s220
      %p222 = scmp.lt.s32.totalorder %s221, 31
      %s223 = scalar_select %p222, %s221, 31
      %s224 = smul.addr %s223, 4
      %s225 = scalar_lea.vmem %s4, %s224
      %s226 = ssub.s32 1, %s19
      %s227 = smul.u32 %s226, %s20
      %s228 = smul.u32 %s19, 3
      %s229 = sadd.s32 %s227, %s228
      %s230 = smul.u32 8, %s229
      %p231 = scmp.lt.s32.totalorder %s230, 31
      %s232 = scalar_select %p231, %s230, 31
      %s233 = smul.addr %s232, 14
      %s234 = smul.addr %s233, 4
      %s235 = scalar_lea.vmem %s0, %s234
      %s236 = ssub.s32 1, %s19
      %s237 = smul.u32 %s236, %s20
      %s238 = smul.u32 %s19, 3
      %s239 = sadd.s32 %s237, %s238
      %s240 = smul.u32 8, %s239
      %s241 = smul.u32 %s19, %s20
      %s242 = smul.u32 8, %s241
      %p243 = scmp.lt.s32.totalorder %s242, 31
      %s244 = scalar_select %p243, %s242, 31
      %s245 = smul.addr %s244, 4
      %s246 = scalar_lea.vmem %s4, %s245
      %s247 = smul.u32 %s19, %s20
      %s248 = smul.u32 8, %s247
      %p250 = scmp.eq.s32.totalorder %s19, 0
      %p251 = scmp.eq.s32.totalorder %s20, 0
      %p252 = pnand %p250, %p251
      %p253 = pneg %p252
      // Predicated region
      $region37: #{spatio_temporal_conv.1} parent=35 // pred_check
        _
      $region38: #{spatio_temporal_conv.1} parent=35 // pred_check_branch
        %255 = sbr.rel (%p252) target = $region40
      $region39: #{spatio_temporal_conv.1} parent=35 // pred_region
        %256 = vst [vmem:[#allocation3] sm:$0x1] 0.0
        %257 = vst [vmem:[#allocation4] sm:$0x1] 0.0
      $region40: #{spatio_temporal_conv.1} parent=35 // pred_fallthru
        _
      // Predicated region
      $region41: #{spatio_temporal_conv.1} parent=35 // pred_check
        %p258 = pneg %p250
      $region42: #{spatio_temporal_conv.1} parent=35 // pred_check_branch
        %260 = sbr.rel (%p258) target = $region44
      $region43: #{spatio_temporal_conv.1} parent=35 // pred_region
        %v261 = vld [vmem:[%s235] sm:$0xff]
        %v262 = vld [vmem:[%s235 + $0x8] sm:$0xff]
        %v263 = vld [vmem:[%s235 + $0x10] sm:$0xff]
        %v264 = vld [vmem:[%s235 + $0x18] sm:$0xff]
        %v265 = vld [vmem:[%s235 + $0x20] sm:$0xff]
        %v266 = vld [vmem:[%s235 + $0x28] sm:$0xff]
        %v267 = vld [vmem:[%s235 + $0x30] sm:$0xff]
        %v268 = vld [vmem:[%s235 + $0x38] sm:$0xff]
        %v269 = vld [vmem:[%s235 + $0x40] sm:$0xff]
        %v270 = vld [vmem:[%s235 + $0x48] sm:$0xff]
        %v271 = vld [vmem:[%s235 + $0x50] sm:$0xff]
        %v272 = vld [vmem:[%s235 + $0x58] sm:$0xff]
        %v273 = vld [vmem:[%s235 + $0x60] sm:$0xff]
        %v274 = vld [vmem:[%s235 + $0x68] sm:$0xff]
        %v275 = vld [vmem:[%s235 + $0x70] sm:$0xff]
        %v276 = vld [vmem:[%s235 + $0x78] sm:$0xff]
        %v277 = vld [vmem:[%s235 + $0x80] sm:$0xff]
        %v278 = vld [vmem:[%s235 + $0x88] sm:$0xff]
        %v279 = vld [vmem:[%s235 + $0x90] sm:$0xff]
        %v280 = vld [vmem:[%s235 + $0x98] sm:$0xff]
        %v281 = vld [vmem:[%s235 + $0xa0] sm:$0xff]
        %v282 = vld [vmem:[%s235 + $0xa8] sm:$0xff]
        %v283 = vld [vmem:[%s235 + $0xb0] sm:$0xff]
        %v284 = vld [vmem:[%s235 + $0xb8] sm:$0xff]
        %v285 = vld [vmem:[%s235 + $0xc0] sm:$0xff]
        %v286 = vld [vmem:[%s235 + $0xc8] sm:$0xff]
        %v287 = vld [vmem:[%s235 + $0xd0] sm:$0xff]
        %v288 = vld [vmem:[%s235 + $0xd8] sm:$0xff]
        %v289 = vld [vmem:[%s235 + $0xe0] sm:$0xff]
        %v290 = vld [vmem:[%s235 + $0xe8] sm:$0xff]
        %v291 = vld [vmem:[%s235 + $0xf0] sm:$0xff]
        %v292 = vld [vmem:[%s235 + $0xf8] sm:$0xff]
        %v293 = vld [vmem:[%s235 + $0x100] sm:$0xff]
        %v294 = vld [vmem:[%s235 + $0x108] sm:$0xff]
        %v295 = vld [vmem:[%s235 + $0x110] sm:$0xff]
        %v296 = vld [vmem:[%s235 + $0x118] sm:$0xff]
        %v297 = vld [vmem:[%s235 + $0x120] sm:$0xff]
        %v298 = vld [vmem:[%s235 + $0x128] sm:$0xff]
        %v299 = vld [vmem:[%s235 + $0x130] sm:$0xff]
        %v300 = vld [vmem:[%s235 + $0x138] sm:$0xff]
        %v301 = vld [vmem:[%s235 + $0x140] sm:$0xff]
        %v302 = vld [vmem:[%s235 + $0x148] sm:$0xff]
        %v303 = vld [vmem:[%s235 + $0x150] sm:$0xff]
        %v304 = vld [vmem:[%s235 + $0x158] sm:$0xff]
        %v305 = vld [vmem:[%s235 + $0x160] sm:$0xff]
        %v306 = vld [vmem:[%s235 + $0x168] sm:$0xff]
        %v307 = vld [vmem:[%s235 + $0x170] sm:$0xff]
        %v308 = vld [vmem:[%s235 + $0x178] sm:$0xff]
        %v309 = vld [vmem:[%s235 + $0x180] sm:$0xff]
        %v310 = vld [vmem:[%s235 + $0x188] sm:$0xff]
        %v311 = vld [vmem:[%s235 + $0x190] sm:$0xff]
        %v312 = vld [vmem:[%s235 + $0x198] sm:$0xff]
        %v313 = vld [vmem:[%s235 + $0x1a0] sm:$0xff]
        %v314 = vld [vmem:[%s235 + $0x1a8] sm:$0xff]
        %v315 = vld [vmem:[%s235 + $0x1b0] sm:$0xff]
        %v316 = vld [vmem:[%s235 + $0x1b8] sm:$0xff]
        %v317 = vld [vmem:[%s1] sm:$0xf]
        %v318 = vld [vmem:[%s1 + $0x4] sm:$0xf]
        %v319 = vld [vmem:[%s1 + $0x8] sm:$0xf]
        %v320 = vld [vmem:[%s1 + $0xc] sm:$0xf]
        %v321 = vld [vmem:[%s1 + $0x10] sm:$0xf]
        %v322 = vld [vmem:[%s1 + $0x14] sm:$0xf]
        %v323 = vld [vmem:[%s1 + $0x18] sm:$0xf]
        %v324 = vld [vmem:[%s1 + $0x1c] sm:$0xf]
        %v325 = vld [vmem:[%s1 + $0x20] sm:$0xf]
        %v326 = vld [vmem:[%s1 + $0x24] sm:$0xf]
        %v327 = vld [vmem:[%s1 + $0x28] sm:$0xf]
        %v328 = vld [vmem:[%s1 + $0x2c] sm:$0xf]
        %v329 = vld [vmem:[%s1 + $0x30] sm:$0xf]
        %v330 = vld [vmem:[%s1 + $0x34] sm:$0xf]
        %v331 = vld [vmem:[%s1 + $0x38] sm:$0xf]
        %v332 = vld [vmem:[%s1 + $0x3c] sm:$0xf]
        %v333 = vld [vmem:[%s1 + $0x40] sm:$0xf]
        %v334 = vld [vmem:[%s1 + $0x44] sm:$0xf]
        %v335 = vld [vmem:[%s1 + $0x48] sm:$0xf]
        %v336 = vld [vmem:[%s1 + $0x4c] sm:$0xf]
        %v337 = vld [vmem:[%s1 + $0x50] sm:$0xf]
        %v338 = vld [vmem:[%s1 + $0x54] sm:$0xf]
        %v339 = vld [vmem:[%s1 + $0x58] sm:$0xf]
        %v340 = vld [vmem:[%s1 + $0x5c] sm:$0xf]
        %v341 = vld [vmem:[%s1 + $0x60] sm:$0xf]
        %v342 = vld [vmem:[%s1 + $0x64] sm:$0xf]
        %v343 = vld [vmem:[%s1 + $0x68] sm:$0xf]
        %v344 = vld [vmem:[%s1 + $0x6c] sm:$0xf]
        %v345 = vld [vmem:[%s1 + $0x70] sm:$0xf]
        %v346 = vld [vmem:[%s1 + $0x74] sm:$0xf]
        %v347 = vld [vmem:[%s1 + $0x78] sm:$0xf]
        %v348 = vld [vmem:[%s1 + $0x7c] sm:$0xf]
        %v349 = vld [vmem:[%s1 + $0x80] sm:$0xf]
        %v350 = vld [vmem:[%s1 + $0x84] sm:$0xf]
        %v351 = vld [vmem:[%s1 + $0x88] sm:$0xf]
        %v352 = vld [vmem:[%s1 + $0x8c] sm:$0xf]
        %v353 = vld [vmem:[%s1 + $0x90] sm:$0xf]
        %v354 = vld [vmem:[%s1 + $0x94] sm:$0xf]
        %v355 = vld [vmem:[%s1 + $0x98] sm:$0xf]
        %v356 = vld [vmem:[%s1 + $0x9c] sm:$0xf]
        %v357 = vld [vmem:[%s1 + $0xa0] sm:$0xf]
        %v358 = vld [vmem:[%s1 + $0xa4] sm:$0xf]
        %v359 = vld [vmem:[%s1 + $0xa8] sm:$0xf]
        %v360 = vld [vmem:[%s1 + $0xac] sm:$0xf]
        %v361 = vld [vmem:[%s1 + $0xb0] sm:$0xf]
        %v362 = vld [vmem:[%s1 + $0xb4] sm:$0xf]
        %v363 = vld [vmem:[%s1 + $0xb8] sm:$0xf]
        %v364 = vld [vmem:[%s1 + $0xbc] sm:$0xf]
        %v365 = vld [vmem:[%s1 + $0xc0] sm:$0xf]
        %v366 = vld [vmem:[%s1 + $0xc4] sm:$0xf]
        %v367 = vld [vmem:[%s1 + $0xc8] sm:$0xf]
        %v368 = vld [vmem:[%s1 + $0xcc] sm:$0xf]
        %v369 = vld [vmem:[%s1 + $0xd0] sm:$0xf]
        %v370 = vld [vmem:[%s1 + $0xd4] sm:$0xf]
        %v371 = vld [vmem:[%s1 + $0xd8] sm:$0xf]
        %v372 = vld [vmem:[%s1 + $0xdc] sm:$0xf]
        %v373 = vld [vmem:[%s1 + $0xe0] sm:$0xf]
        %v374 = vld [vmem:[%s1 + $0xe4] sm:$0xf]
        %v375 = vld [vmem:[%s1 + $0xe8] sm:$0xf]
        %v376 = vld [vmem:[%s1 + $0xec] sm:$0xf]
        %v377 = vld [vmem:[%s1 + $0xf0] sm:$0xf]
        %v378 = vld [vmem:[%s1 + $0xf4] sm:$0xf]
        %v379 = vld [vmem:[%s1 + $0xf8] sm:$0xf]
        %v380 = vld [vmem:[%s1 + $0xfc] sm:$0xf]
        %v381 = vld [vmem:[%s1 + $0x100] sm:$0xf]
        %v382 = vld [vmem:[%s1 + $0x104] sm:$0xf]
        %v383 = vld [vmem:[%s1 + $0x108] sm:$0xf]
        %v384 = vld [vmem:[%s1 + $0x10c] sm:$0xf]
        %v385 = vld [vmem:[%s1 + $0x110] sm:$0xf]
        %v386 = vld [vmem:[%s1 + $0x114] sm:$0xf]
        %v387 = vld [vmem:[%s1 + $0x118] sm:$0xf]
        %v388 = vld [vmem:[%s1 + $0x11c] sm:$0xf]
        %v389 = vld [vmem:[%s1 + $0x120] sm:$0xf]
        %v390 = vld [vmem:[%s1 + $0x124] sm:$0xf]
        %v391 = vld [vmem:[%s1 + $0x128] sm:$0xf]
        %v392 = vld [vmem:[%s1 + $0x12c] sm:$0xf]
        %v393 = vld [vmem:[%s1 + $0x130] sm:$0xf]
        %v394 = vld [vmem:[%s1 + $0x134] sm:$0xf]
        %v395 = vld [vmem:[%s1 + $0x138] sm:$0xf]
        %v396 = vld [vmem:[%s1 + $0x13c] sm:$0xf]
        %v397 = vld [vmem:[%s1 + $0x140] sm:$0xf]
        %v398 = vld [vmem:[%s1 + $0x144] sm:$0xf]
        %v399 = vld [vmem:[%s1 + $0x148] sm:$0xf]
        %v400 = vld [vmem:[%s1 + $0x14c] sm:$0xf]
        %v401 = vld [vmem:[%s1 + $0x150] sm:$0xf]
        %v402 = vld [vmem:[%s1 + $0x154] sm:$0xf]
        %v403 = vld [vmem:[%s1 + $0x158] sm:$0xf]
        %v404 = vld [vmem:[%s1 + $0x15c] sm:$0xf]
        %v405 = vld [vmem:[%s1 + $0x160] sm:$0xf]
        %v406 = vld [vmem:[%s1 + $0x164] sm:$0xf]
        %v407 = vld [vmem:[%s1 + $0x168] sm:$0xf]
        %v408 = vld [vmem:[%s1 + $0x16c] sm:$0xf]
        %v409 = vld [vmem:[%s1 + $0x170] sm:$0xf]
        %v410 = vld [vmem:[%s1 + $0x174] sm:$0xf]
        %v411 = vld [vmem:[%s1 + $0x178] sm:$0xf]
        %v412 = vld [vmem:[%s1 + $0x17c] sm:$0xf]
        %v413 = vld [vmem:[%s1 + $0x180] sm:$0xf]
        %v414 = vld [vmem:[%s1 + $0x184] sm:$0xf]
        %v415 = vld [vmem:[%s1 + $0x188] sm:$0xf]
        %v416 = vld [vmem:[%s1 + $0x18c] sm:$0xf]
        %v417 = vld [vmem:[%s1 + $0x190] sm:$0xf]
        %v418 = vld [vmem:[%s1 + $0x194] sm:$0xf]
        %v419 = vld [vmem:[%s1 + $0x198] sm:$0xf]
        %v420 = vld [vmem:[%s1 + $0x19c] sm:$0xf]
        %v421 = vld [vmem:[%s1 + $0x1a0] sm:$0xf]
        %v422 = vld [vmem:[%s1 + $0x1a4] sm:$0xf]
        %v423 = vld [vmem:[%s1 + $0x1a8] sm:$0xf]
        %v424 = vld [vmem:[%s1 + $0x1ac] sm:$0xf]
        %v425 = vld [vmem:[%s1 + $0x1b0] sm:$0xf]
        %v426 = vld [vmem:[%s1 + $0x1b4] sm:$0xf]
        %v427 = vld [vmem:[%s1 + $0x1b8] sm:$0xf]
        %v428 = vld [vmem:[%s1 + $0x1bc] sm:$0xf]
        %v429 = vld [vmem:[%s1 + $0x1c0] sm:$0xf]
        %v430 = vld [vmem:[%s1 + $0x1c4] sm:$0xf]
        %v431 = vld [vmem:[%s1 + $0x1c8] sm:$0xf]
        %v432 = vld [vmem:[%s1 + $0x1cc] sm:$0xf]
        %v433 = vld [vmem:[%s1 + $0x1d0] sm:$0xf]
        %v434 = vld [vmem:[%s1 + $0x1d4] sm:$0xf]
        %v435 = vld [vmem:[%s1 + $0x1d8] sm:$0xf]
        %v436 = vld [vmem:[%s1 + $0x1dc] sm:$0xf]
        %v437 = vld [vmem:[%s1 + $0x1e0] sm:$0xf]
        %v438 = vld [vmem:[%s1 + $0x1e4] sm:$0xf]
        %v439 = vld [vmem:[%s1 + $0x1e8] sm:$0xf]
        %v440 = vld [vmem:[%s1 + $0x1ec] sm:$0xf]
        %v441 = vld [vmem:[%s1 + $0x1f0] sm:$0xf]
        %v442 = vld [vmem:[%s1 + $0x1f4] sm:$0xf]
        %v443 = vld [vmem:[%s1 + $0x1f8] sm:$0xf]
        %v444 = vld [vmem:[%s1 + $0x1fc] sm:$0xf]
        %v445 = vld [vmem:[%s1 + $0x200] sm:$0xf]
        %v446 = vld [vmem:[%s1 + $0x204] sm:$0xf]
        %v447 = vld [vmem:[%s1 + $0x208] sm:$0xf]
        %v448 = vld [vmem:[%s1 + $0x20c] sm:$0xf]
        %v449 = vld [vmem:[%s1 + $0x210] sm:$0xf]
        %v450 = vld [vmem:[%s1 + $0x214] sm:$0xf]
        %v451 = vld [vmem:[%s1 + $0x218] sm:$0xf]
        %v452 = vld [vmem:[%s1 + $0x21c] sm:$0xf]
        %v453 = vld [vmem:[%s1 + $0x220] sm:$0xf]
        %v454 = vld [vmem:[%s1 + $0x224] sm:$0xf]
        %v455 = vld [vmem:[%s1 + $0x228] sm:$0xf]
        %v456 = vld [vmem:[%s1 + $0x22c] sm:$0xf]
        %v457 = vld [vmem:[%s1 + $0x230] sm:$0xf]
        %v458 = vld [vmem:[%s1 + $0x234] sm:$0xf]
        %v459 = vld [vmem:[%s1 + $0x238] sm:$0xf]
        %v460 = vld [vmem:[%s1 + $0x23c] sm:$0xf]
        %v461 = vld [vmem:[%s1 + $0x240] sm:$0xf]
        %v462 = vld [vmem:[%s1 + $0x244] sm:$0xf]
        %v463 = vld [vmem:[%s1 + $0x248] sm:$0xf]
        %v464 = vld [vmem:[%s1 + $0x24c] sm:$0xf]
        %v465 = vld [vmem:[%s1 + $0x250] sm:$0xf]
        %v466 = vld [vmem:[%s1 + $0x254] sm:$0xf]
        %v467 = vld [vmem:[%s1 + $0x258] sm:$0xf]
        %v468 = vld [vmem:[%s1 + $0x25c] sm:$0xf]
        %v469 = vld [vmem:[%s1 + $0x260] sm:$0xf]
        %v470 = vld [vmem:[%s1 + $0x264] sm:$0xf]
        %v471 = vld [vmem:[%s1 + $0x268] sm:$0xf]
        %v472 = vld [vmem:[%s1 + $0x26c] sm:$0xf]
        %v473 = vld [vmem:[%s1 + $0x270] sm:$0xf]
        %v474 = vld [vmem:[%s1 + $0x274] sm:$0xf]
        %v475 = vld [vmem:[%s1 + $0x278] sm:$0xf]
        %v476 = vld [vmem:[%s1 + $0x27c] sm:$0xf]
        %v477 = vld [vmem:[%s1 + $0x280] sm:$0xf]
        %v478 = vld [vmem:[%s1 + $0x284] sm:$0xf]
        %v479 = vld [vmem:[%s1 + $0x288] sm:$0xf]
        %v480 = vld [vmem:[%s1 + $0x28c] sm:$0xf]
        %v481 = vld [vmem:[%s1 + $0x290] sm:$0xf]
        %v482 = vld [vmem:[%s1 + $0x294] sm:$0xf]
        %v483 = vld [vmem:[%s1 + $0x298] sm:$0xf]
        %v484 = vld [vmem:[%s1 + $0x29c] sm:$0xf]
        %v485 = vld [vmem:[%s1 + $0x2a0] sm:$0xf]
        %v486 = vld [vmem:[%s1 + $0x2a4] sm:$0xf]
        %v487 = vld [vmem:[%s1 + $0x2a8] sm:$0xf]
        %v488 = vld [vmem:[%s1 + $0x2ac] sm:$0xf]
        %v489 = vld [vmem:[%s1 + $0x2b0] sm:$0xf]
        %v490 = vld [vmem:[%s1 + $0x2b4] sm:$0xf]
        %v491 = vld [vmem:[%s1 + $0x2b8] sm:$0xf]
        %v492 = vld [vmem:[%s1 + $0x2bc] sm:$0xf]
        %v493 = vld [vmem:[%s1 + $0x2c0] sm:$0xf]
        %v494 = vld [vmem:[%s1 + $0x2c4] sm:$0xf]
        %v495 = vld [vmem:[%s1 + $0x2c8] sm:$0xf]
        %v496 = vld [vmem:[%s1 + $0x2cc] sm:$0xf]
        %v497 = vld [vmem:[%s1 + $0x2d0] sm:$0xf]
        %v498 = vld [vmem:[%s1 + $0x2d4] sm:$0xf]
        %v499 = vld [vmem:[%s1 + $0x2d8] sm:$0xf]
        %v500 = vld [vmem:[%s1 + $0x2dc] sm:$0xf]
        %v501 = vld [vmem:[%s1 + $0x2e0] sm:$0xf]
        %v502 = vld [vmem:[%s1 + $0x2e4] sm:$0xf]
        %v503 = vld [vmem:[%s1 + $0x2e8] sm:$0xf]
        %v504 = vld [vmem:[%s1 + $0x2ec] sm:$0xf]
        %v505 = vld [vmem:[%s1 + $0x2f0] sm:$0xf]
        %v506 = vld [vmem:[%s1 + $0x2f4] sm:$0xf]
        %v507 = vld [vmem:[%s1 + $0x2f8] sm:$0xf]
        %v508 = vld [vmem:[%s1 + $0x2fc] sm:$0xf]
        %v509 = vld [vmem:[%s1 + $0x300] sm:$0xf]
        %v510 = vld [vmem:[%s1 + $0x304] sm:$0xf]
        %v511 = vld [vmem:[%s1 + $0x308] sm:$0xf]
        %v512 = vld [vmem:[%s1 + $0x30c] sm:$0xf]
        %v513 = vld [vmem:[%s1 + $0x310] sm:$0xf]
        %v514 = vld [vmem:[%s1 + $0x314] sm:$0xf]
        %v515 = vld [vmem:[%s1 + $0x318] sm:$0xf]
        %v516 = vld [vmem:[%s1 + $0x31c] sm:$0xf]
        %v517 = vld [vmem:[%s1 + $0x320] sm:$0xf]
        %v518 = vld [vmem:[%s1 + $0x324] sm:$0xf]
        %v519 = vld [vmem:[%s1 + $0x328] sm:$0xf]
        %v520 = vld [vmem:[%s1 + $0x32c] sm:$0xf]
        %v521 = vld [vmem:[%s1 + $0x330] sm:$0xf]
        %v522 = vld [vmem:[%s1 + $0x334] sm:$0xf]
        %v523 = vld [vmem:[%s1 + $0x338] sm:$0xf]
        %v524 = vld [vmem:[%s1 + $0x33c] sm:$0xf]
        %v525 = vld [vmem:[%s1 + $0x340] sm:$0xf]
        %v526 = vld [vmem:[%s1 + $0x344] sm:$0xf]
        %v527 = vld [vmem:[%s1 + $0x348] sm:$0xf]
        %v528 = vld [vmem:[%s1 + $0x34c] sm:$0xf]
        %v529 = vld [vmem:[%s1 + $0x350] sm:$0xf]
        %v530 = vld [vmem:[%s1 + $0x354] sm:$0xf]
        %v531 = vld [vmem:[%s1 + $0x358] sm:$0xf]
        %v532 = vld [vmem:[%s1 + $0x35c] sm:$0xf]
        %v589 = vunpack.c.l.b16 %v261
        %v590 = vunpack.c.h.b16 %v261
        %v591 = vunpack.c.l.b16 %v262
        %v592 = vunpack.c.h.b16 %v262
        %v593 = vunpack.c.l.b16 %v263
        %v594 = vunpack.c.h.b16 %v263
        %v595 = vunpack.c.l.b16 %v264
        %v596 = vunpack.c.h.b16 %v264
        %v597 = vunpack.c.l.b16 %v265
        %v598 = vunpack.c.h.b16 %v265
        %v599 = vunpack.c.l.b16 %v266
        %v600 = vunpack.c.h.b16 %v266
        %v601 = vunpack.c.l.b16 %v267
        %v602 = vunpack.c.h.b16 %v267
        %v603 = vunpack.c.l.b16 %v268
        %v604 = vunpack.c.h.b16 %v268
        %v605 = vunpack.c.l.b16 %v269
        %v606 = vunpack.c.h.b16 %v269
        %v607 = vunpack.c.l.b16 %v270
        %v608 = vunpack.c.h.b16 %v270
        %v609 = vunpack.c.l.b16 %v271
        %v610 = vunpack.c.h.b16 %v271
        %v611 = vunpack.c.l.b16 %v272
        %v612 = vunpack.c.h.b16 %v272
        %v613 = vunpack.c.l.b16 %v273
        %v614 = vunpack.c.h.b16 %v273
        %v615 = vunpack.c.l.b16 %v274
        %v616 = vunpack.c.h.b16 %v274
        %v617 = vunpack.c.l.b16 %v275
        %v618 = vunpack.c.h.b16 %v275
        %v619 = vunpack.c.l.b16 %v276
        %v620 = vunpack.c.h.b16 %v276
        %v621 = vunpack.c.l.b16 %v277
        %v622 = vunpack.c.h.b16 %v277
        %v623 = vunpack.c.l.b16 %v278
        %v624 = vunpack.c.h.b16 %v278
        %v625 = vunpack.c.l.b16 %v279
        %v626 = vunpack.c.h.b16 %v279
        %v627 = vunpack.c.l.b16 %v280
        %v628 = vunpack.c.h.b16 %v280
        %v629 = vunpack.c.l.b16 %v281
        %v630 = vunpack.c.h.b16 %v281
        %v631 = vunpack.c.l.b16 %v282
        %v632 = vunpack.c.h.b16 %v282
        %v633 = vunpack.c.l.b16 %v283
        %v634 = vunpack.c.h.b16 %v283
        %v635 = vunpack.c.l.b16 %v284
        %v636 = vunpack.c.h.b16 %v284
        %v637 = vunpack.c.l.b16 %v285
        %v638 = vunpack.c.h.b16 %v285
        %v639 = vunpack.c.l.b16 %v286
        %v640 = vunpack.c.h.b16 %v286
        %v641 = vunpack.c.l.b16 %v287
        %v642 = vunpack.c.h.b16 %v287
        %v643 = vunpack.c.l.b16 %v288
        %v644 = vunpack.c.h.b16 %v288
        %v645 = vunpack.c.l.b16 %v289
        %v646 = vunpack.c.h.b16 %v289
        %v647 = vunpack.c.l.b16 %v290
        %v648 = vunpack.c.h.b16 %v290
        %v649 = vunpack.c.l.b16 %v291
        %v650 = vunpack.c.h.b16 %v291
        %v651 = vunpack.c.l.b16 %v292
        %v652 = vunpack.c.h.b16 %v292
        %v653 = vunpack.c.l.b16 %v293
        %v654 = vunpack.c.h.b16 %v293
        %v655 = vunpack.c.l.b16 %v294
        %v656 = vunpack.c.h.b16 %v294
        %v657 = vunpack.c.l.b16 %v295
        %v658 = vunpack.c.h.b16 %v295
        %v659 = vunpack.c.l.b16 %v296
        %v660 = vunpack.c.h.b16 %v296
        %v661 = vunpack.c.l.b16 %v297
        %v662 = vunpack.c.h.b16 %v297
        %v663 = vunpack.c.l.b16 %v298
        %v664 = vunpack.c.h.b16 %v298
        %v665 = vunpack.c.l.b16 %v299
        %v666 = vunpack.c.h.b16 %v299
        %v667 = vunpack.c.l.b16 %v300
        %v668 = vunpack.c.h.b16 %v300
        %v669 = vunpack.c.l.b16 %v301
        %v670 = vunpack.c.h.b16 %v301
        %v671 = vunpack.c.l.b16 %v302
        %v672 = vunpack.c.h.b16 %v302
        %v673 = vunpack.c.l.b16 %v303
        %v674 = vunpack.c.h.b16 %v303
        %v675 = vunpack.c.l.b16 %v304
        %v676 = vunpack.c.h.b16 %v304
        %v677 = vunpack.c.l.b16 %v305
        %v678 = vunpack.c.h.b16 %v305
        %v679 = vunpack.c.l.b16 %v306
        %v680 = vunpack.c.h.b16 %v306
        %v681 = vunpack.c.l.b16 %v307
        %v682 = vunpack.c.h.b16 %v307
        %v683 = vunpack.c.l.b16 %v308
        %v684 = vunpack.c.h.b16 %v308
        %v685 = vunpack.c.l.b16 %v309
        %v686 = vunpack.c.h.b16 %v309
        %v687 = vunpack.c.l.b16 %v310
        %v688 = vunpack.c.h.b16 %v310
        %v689 = vunpack.c.l.b16 %v311
        %v690 = vunpack.c.h.b16 %v311
        %v691 = vunpack.c.l.b16 %v312
        %v692 = vunpack.c.h.b16 %v312
        %v693 = vunpack.c.l.b16 %v313
        %v694 = vunpack.c.h.b16 %v313
        %v695 = vunpack.c.l.b16 %v314
        %v696 = vunpack.c.h.b16 %v314
        %v697 = vunpack.c.l.b16 %v315
        %v698 = vunpack.c.h.b16 %v315
        %v699 = vunpack.c.l.b16 %v316
        %v700 = vunpack.c.h.b16 %v316
        %v701 = vpack.c.b16 %v603, %v589
        %v702 = vpack.c.b16 %v604, %v590
        %v703 = vpack.c.b16 %v605, %v591
        %v704 = vpack.c.b16 %v606, %v592
        %v705 = vpack.c.b16 %v607, %v593
        %v706 = vpack.c.b16 %v608, %v594
        %v707 = vpack.c.b16 %v609, %v595
        %v708 = vpack.c.b16 %v610, %v596
        %v709 = vpack.c.b16 %v611, %v597
        %v710 = vpack.c.b16 %v612, %v598
        %v711 = vpack.c.b16 %v613, %v599
        %v712 = vpack.c.b16 %v614, %v600
        %v713 = vpack.c.b16 %v615, %v601
        %v714 = vpack.c.b16 %v616, %v602
        %v715 = vpack.c.b16 %v631, %v617
        %v716 = vpack.c.b16 %v632, %v618
        %v717 = vpack.c.b16 %v633, %v619
        %v718 = vpack.c.b16 %v634, %v620
        %v719 = vpack.c.b16 %v635, %v621
        %v720 = vpack.c.b16 %v636, %v622
        %v721 = vpack.c.b16 %v637, %v623
        %v722 = vpack.c.b16 %v638, %v624
        %v723 = vpack.c.b16 %v639, %v625
        %v724 = vpack.c.b16 %v640, %v626
        %v725 = vpack.c.b16 %v641, %v627
        %v726 = vpack.c.b16 %v642, %v628
        %v727 = vpack.c.b16 %v643, %v629
        %v728 = vpack.c.b16 %v644, %v630
        %v729 = vpack.c.b16 %v659, %v645
        %v730 = vpack.c.b16 %v660, %v646
        %v731 = vpack.c.b16 %v661, %v647
        %v732 = vpack.c.b16 %v662, %v648
        %v733 = vpack.c.b16 %v663, %v649
        %v734 = vpack.c.b16 %v664, %v650
        %v735 = vpack.c.b16 %v665, %v651
        %v736 = vpack.c.b16 %v666, %v652
        %v737 = vpack.c.b16 %v667, %v653
        %v738 = vpack.c.b16 %v668, %v654
        %v739 = vpack.c.b16 %v669, %v655
        %v740 = vpack.c.b16 %v670, %v656
        %v741 = vpack.c.b16 %v671, %v657
        %v742 = vpack.c.b16 %v672, %v658
        %v743 = vpack.c.b16 %v687, %v673
        %v744 = vpack.c.b16 %v688, %v674
        %v745 = vpack.c.b16 %v689, %v675
        %v746 = vpack.c.b16 %v690, %v676
        %v747 = vpack.c.b16 %v691, %v677
        %v748 = vpack.c.b16 %v692, %v678
        %v749 = vpack.c.b16 %v693, %v679
        %v750 = vpack.c.b16 %v694, %v680
        %v751 = vpack.c.b16 %v695, %v681
        %v752 = vpack.c.b16 %v696, %v682
        %v753 = vpack.c.b16 %v697, %v683
        %v754 = vpack.c.b16 %v698, %v684
        %v755 = vpack.c.b16 %v699, %v685
        %v756 = vpack.c.b16 %v700, %v686
        %v1025 = vunpack.c.l.b16 %v317
        %v1026 = vunpack.c.l.b16 %v318
        %v1027 = vunpack.c.l.b16 %v319
        %v1028 = vunpack.c.l.b16 %v320
        %v1029 = vunpack.c.l.b16 %v321
        %v1030 = vunpack.c.l.b16 %v322
        %v1031 = vunpack.c.l.b16 %v323
        %v1032 = vunpack.c.l.b16 %v324
        %v1033 = vunpack.c.l.b16 %v325
        %v1034 = vunpack.c.l.b16 %v326
        %v1035 = vunpack.c.l.b16 %v327
        %v1036 = vunpack.c.l.b16 %v328
        %v1037 = vunpack.c.l.b16 %v329
        %v1038 = vunpack.c.l.b16 %v330
        %v1039 = vunpack.c.l.b16 %v331
        %v1040 = vunpack.c.l.b16 %v332
        %v1041 = vunpack.c.l.b16 %v333
        %v1042 = vunpack.c.l.b16 %v334
        %v1043 = vunpack.c.l.b16 %v335
        %v1044 = vunpack.c.l.b16 %v336
        %v1045 = vunpack.c.l.b16 %v337
        %v1046 = vunpack.c.l.b16 %v338
        %v1047 = vunpack.c.l.b16 %v339
        %v1048 = vunpack.c.l.b16 %v340
        %v1049 = vunpack.c.l.b16 %v341
        %v1050 = vunpack.c.l.b16 %v342
        %v1051 = vunpack.c.l.b16 %v343
        %v1052 = vunpack.c.l.b16 %v344
        %v1053 = vunpack.c.l.b16 %v345
        %v1054 = vunpack.c.l.b16 %v346
        %v1055 = vunpack.c.l.b16 %v347
        %v1056 = vunpack.c.l.b16 %v348
        %v1057 = vunpack.c.l.b16 %v349
        %v1058 = vunpack.c.l.b16 %v350
        %v1059 = vunpack.c.l.b16 %v351
        %v1060 = vunpack.c.l.b16 %v352
        %v1061 = vunpack.c.l.b16 %v353
        %v1062 = vunpack.c.l.b16 %v354
        %v1063 = vunpack.c.l.b16 %v355
        %v1064 = vunpack.c.l.b16 %v356
        %v1065 = vunpack.c.l.b16 %v357
        %v1066 = vunpack.c.l.b16 %v358
        %v1067 = vunpack.c.l.b16 %v359
        %v1068 = vunpack.c.l.b16 %v360
        %v1069 = vunpack.c.l.b16 %v361
        %v1070 = vunpack.c.l.b16 %v362
        %v1071 = vunpack.c.l.b16 %v363
        %v1072 = vunpack.c.l.b16 %v364
        %v1073 = vunpack.c.l.b16 %v365
        %v1074 = vunpack.c.l.b16 %v366
        %v1075 = vunpack.c.l.b16 %v367
        %v1076 = vunpack.c.l.b16 %v368
        %v1077 = vunpack.c.l.b16 %v369
        %v1078 = vunpack.c.l.b16 %v370
        %v1079 = vunpack.c.l.b16 %v371
        %v1080 = vunpack.c.l.b16 %v372
        %v1081 = vunpack.c.l.b16 %v373
        %v1082 = vunpack.c.l.b16 %v374
        %v1083 = vunpack.c.l.b16 %v375
        %v1084 = vunpack.c.l.b16 %v376
        %v1085 = vunpack.c.l.b16 %v377
        %v1086 = vunpack.c.l.b16 %v378
        %v1087 = vunpack.c.l.b16 %v379
        %v1088 = vunpack.c.l.b16 %v380
        %v1089 = vunpack.c.l.b16 %v381
        %v1090 = vunpack.c.l.b16 %v382
        %v1091 = vunpack.c.l.b16 %v383
        %v1092 = vunpack.c.l.b16 %v384
        %v1093 = vunpack.c.l.b16 %v385
        %v1094 = vunpack.c.l.b16 %v386
        %v1095 = vunpack.c.l.b16 %v387
        %v1096 = vunpack.c.l.b16 %v388
        %v1097 = vunpack.c.l.b16 %v389
        %v1098 = vunpack.c.l.b16 %v390
        %v1099 = vunpack.c.l.b16 %v391
        %v1100 = vunpack.c.l.b16 %v392
        %v1101 = vunpack.c.l.b16 %v393
        %v1102 = vunpack.c.l.b16 %v394
        %v1103 = vunpack.c.l.b16 %v395
        %v1104 = vunpack.c.l.b16 %v396
        %v1105 = vunpack.c.l.b16 %v397
        %v1106 = vunpack.c.l.b16 %v398
        %v1107 = vunpack.c.l.b16 %v399
        %v1108 = vunpack.c.l.b16 %v400
        %v1109 = vunpack.c.l.b16 %v401
        %v1110 = vunpack.c.l.b16 %v402
        %v1111 = vunpack.c.l.b16 %v403
        %v1112 = vunpack.c.l.b16 %v404
        %v1113 = vunpack.c.l.b16 %v405
        %v1114 = vunpack.c.l.b16 %v406
        %v1115 = vunpack.c.l.b16 %v407
        %v1116 = vunpack.c.l.b16 %v408
        %v1117 = vunpack.c.l.b16 %v409
        %v1118 = vunpack.c.l.b16 %v410
        %v1119 = vunpack.c.l.b16 %v411
        %v1120 = vunpack.c.l.b16 %v412
        %v1121 = vunpack.c.l.b16 %v413
        %v1122 = vunpack.c.l.b16 %v414
        %v1123 = vunpack.c.l.b16 %v415
        %v1124 = vunpack.c.l.b16 %v416
        %v1125 = vunpack.c.l.b16 %v417
        %v1126 = vunpack.c.l.b16 %v418
        %v1127 = vunpack.c.l.b16 %v419
        %v1128 = vunpack.c.l.b16 %v420
        %v1129 = vunpack.c.l.b16 %v421
        %v1130 = vunpack.c.l.b16 %v422
        %v1131 = vunpack.c.l.b16 %v423
        %v1132 = vunpack.c.l.b16 %v424
        %v1133 = vunpack.c.l.b16 %v425
        %v1134 = vunpack.c.l.b16 %v426
        %v1135 = vunpack.c.l.b16 %v427
        %v1136 = vunpack.c.l.b16 %v428
        %v1137 = vunpack.c.l.b16 %v429
        %v1138 = vunpack.c.l.b16 %v430
        %v1139 = vunpack.c.l.b16 %v431
        %v1140 = vunpack.c.l.b16 %v432
        %v1141 = vunpack.c.l.b16 %v433
        %v1142 = vunpack.c.l.b16 %v434
        %v1143 = vunpack.c.l.b16 %v435
        %v1144 = vunpack.c.l.b16 %v436
        %v1145 = vunpack.c.l.b16 %v437
        %v1146 = vunpack.c.l.b16 %v438
        %v1147 = vunpack.c.l.b16 %v439
        %v1148 = vunpack.c.l.b16 %v440
        %v1149 = vunpack.c.l.b16 %v441
        %v1150 = vunpack.c.l.b16 %v442
        %v1151 = vunpack.c.l.b16 %v443
        %v1152 = vunpack.c.l.b16 %v444
        %v1153 = vunpack.c.l.b16 %v445
        %v1154 = vunpack.c.l.b16 %v446
        %v1155 = vunpack.c.l.b16 %v447
        %v1156 = vunpack.c.l.b16 %v448
        %v1157 = vunpack.c.l.b16 %v449
        %v1158 = vunpack.c.l.b16 %v450
        %v1159 = vunpack.c.l.b16 %v451
        %v1160 = vunpack.c.l.b16 %v452
        %v1161 = vunpack.c.l.b16 %v453
        %v1162 = vunpack.c.l.b16 %v454
        %v1163 = vunpack.c.l.b16 %v455
        %v1164 = vunpack.c.l.b16 %v456
        %v1165 = vunpack.c.l.b16 %v457
        %v1166 = vunpack.c.l.b16 %v458
        %v1167 = vunpack.c.l.b16 %v459
        %v1168 = vunpack.c.l.b16 %v460
        %v1169 = vunpack.c.l.b16 %v461
        %v1170 = vunpack.c.l.b16 %v462
        %v1171 = vunpack.c.l.b16 %v463
        %v1172 = vunpack.c.l.b16 %v464
        %v1173 = vunpack.c.l.b16 %v465
        %v1174 = vunpack.c.l.b16 %v466
        %v1175 = vunpack.c.l.b16 %v467
        %v1176 = vunpack.c.l.b16 %v468
        %v1177 = vunpack.c.l.b16 %v469
        %v1178 = vunpack.c.l.b16 %v470
        %v1179 = vunpack.c.l.b16 %v471
        %v1180 = vunpack.c.l.b16 %v472
        %v1181 = vunpack.c.l.b16 %v473
        %v1182 = vunpack.c.l.b16 %v474
        %v1183 = vunpack.c.l.b16 %v475
        %v1184 = vunpack.c.l.b16 %v476
        %v1185 = vunpack.c.l.b16 %v477
        %v1186 = vunpack.c.l.b16 %v478
        %v1187 = vunpack.c.l.b16 %v479
        %v1188 = vunpack.c.l.b16 %v480
        %v1189 = vunpack.c.l.b16 %v481
        %v1190 = vunpack.c.l.b16 %v482
        %v1191 = vunpack.c.l.b16 %v483
        %v1192 = vunpack.c.l.b16 %v484
        %v1193 = vunpack.c.l.b16 %v485
        %v1194 = vunpack.c.l.b16 %v486
        %v1195 = vunpack.c.l.b16 %v487
        %v1196 = vunpack.c.l.b16 %v488
        %v1197 = vunpack.c.l.b16 %v489
        %v1198 = vunpack.c.l.b16 %v490
        %v1199 = vunpack.c.l.b16 %v491
        %v1200 = vunpack.c.l.b16 %v492
        %v1201 = vunpack.c.l.b16 %v493
        %v1202 = vunpack.c.l.b16 %v494
        %v1203 = vunpack.c.l.b16 %v495
        %v1204 = vunpack.c.l.b16 %v496
        %v1205 = vunpack.c.l.b16 %v497
        %v1206 = vunpack.c.l.b16 %v498
        %v1207 = vunpack.c.l.b16 %v499
        %v1208 = vunpack.c.l.b16 %v500
        %v1209 = vunpack.c.l.b16 %v501
        %v1210 = vunpack.c.l.b16 %v502
        %v1211 = vunpack.c.l.b16 %v503
        %v1212 = vunpack.c.l.b16 %v504
        %v1213 = vunpack.c.l.b16 %v505
        %v1214 = vunpack.c.l.b16 %v506
        %v1215 = vunpack.c.l.b16 %v507
        %v1216 = vunpack.c.l.b16 %v508
        %v1217 = vunpack.c.l.b16 %v509
        %v1218 = vunpack.c.l.b16 %v510
        %v1219 = vunpack.c.l.b16 %v511
        %v1220 = vunpack.c.l.b16 %v512
        %v1221 = vunpack.c.l.b16 %v513
        %v1222 = vunpack.c.l.b16 %v514
        %v1223 = vunpack.c.l.b16 %v515
        %v1224 = vunpack.c.l.b16 %v516
        %v1225 = vunpack.c.l.b16 %v517
        %v1226 = vunpack.c.l.b16 %v518
        %v1227 = vunpack.c.l.b16 %v519
        %v1228 = vunpack.c.l.b16 %v520
        %v1229 = vunpack.c.l.b16 %v521
        %v1230 = vunpack.c.l.b16 %v522
        %v1231 = vunpack.c.l.b16 %v523
        %v1232 = vunpack.c.l.b16 %v524
        %v1233 = vunpack.c.l.b16 %v525
        %v1234 = vunpack.c.l.b16 %v526
        %v1235 = vunpack.c.l.b16 %v527
        %v1236 = vunpack.c.l.b16 %v528
        %v1237 = vunpack.c.l.b16 %v529
        %v1238 = vunpack.c.l.b16 %v530
        %v1239 = vunpack.c.l.b16 %v531
        %v1240 = vunpack.c.l.b16 %v532
        %v1241 = vpack.c.b16 %v1026, %v1025
        %v1242 = vpack.c.b16 %v1028, %v1027
        %v1243 = vpack.c.b16 %v1030, %v1029
        %v1244 = vpack.c.b16 %v1032, %v1031
        %v1245 = vpack.c.b16 %v1034, %v1033
        %v1246 = vpack.c.b16 %v1036, %v1035
        %v1247 = vpack.c.b16 %v1038, %v1037
        %v1248 = vpack.c.b16 %v1040, %v1039
        %v1249 = vpack.c.b16 %v1042, %v1041
        %v1250 = vpack.c.b16 %v1044, %v1043
        %v1251 = vpack.c.b16 %v1046, %v1045
        %v1252 = vpack.c.b16 %v1048, %v1047
        %v1253 = vpack.c.b16 %v1050, %v1049
        %v1254 = vpack.c.b16 %v1052, %v1051
        %v1255 = vpack.c.b16 %v1054, %v1053
        %v1256 = vpack.c.b16 %v1056, %v1055
        %v1257 = vpack.c.b16 %v1058, %v1057
        %v1258 = vpack.c.b16 %v1060, %v1059
        %v1259 = vpack.c.b16 %v1062, %v1061
        %v1260 = vpack.c.b16 %v1064, %v1063
        %v1261 = vpack.c.b16 %v1066, %v1065
        %v1262 = vpack.c.b16 %v1068, %v1067
        %v1263 = vpack.c.b16 %v1070, %v1069
        %v1264 = vpack.c.b16 %v1072, %v1071
        %v1265 = vpack.c.b16 %v1074, %v1073
        %v1266 = vpack.c.b16 %v1076, %v1075
        %v1267 = vpack.c.b16 %v1078, %v1077
        %v1268 = vpack.c.b16 %v1080, %v1079
        %v1269 = vpack.c.b16 %v1082, %v1081
        %v1270 = vpack.c.b16 %v1084, %v1083
        %v1271 = vpack.c.b16 %v1086, %v1085
        %v1272 = vpack.c.b16 %v1088, %v1087
        %v1273 = vpack.c.b16 %v1090, %v1089
        %v1274 = vpack.c.b16 %v1092, %v1091
        %v1275 = vpack.c.b16 %v1094, %v1093
        %v1276 = vpack.c.b16 %v1096, %v1095
        %v1277 = vpack.c.b16 %v1098, %v1097
        %v1278 = vpack.c.b16 %v1100, %v1099
        %v1279 = vpack.c.b16 %v1102, %v1101
        %v1280 = vpack.c.b16 %v1104, %v1103
        %v1281 = vpack.c.b16 %v1106, %v1105
        %v1282 = vpack.c.b16 %v1108, %v1107
        %v1283 = vpack.c.b16 %v1110, %v1109
        %v1284 = vpack.c.b16 %v1112, %v1111
        %v1285 = vpack.c.b16 %v1114, %v1113
        %v1286 = vpack.c.b16 %v1116, %v1115
        %v1287 = vpack.c.b16 %v1118, %v1117
        %v1288 = vpack.c.b16 %v1120, %v1119
        %v1289 = vpack.c.b16 %v1122, %v1121
        %v1290 = vpack.c.b16 %v1124, %v1123
        %v1291 = vpack.c.b16 %v1126, %v1125
        %v1292 = vpack.c.b16 %v1128, %v1127
        %v1293 = vpack.c.b16 %v1130, %v1129
        %v1294 = vpack.c.b16 %v1132, %v1131
        %v1295 = vpack.c.b16 %v1134, %v1133
        %v1296 = vpack.c.b16 %v1136, %v1135
        %v1297 = vpack.c.b16 %v1138, %v1137
        %v1298 = vpack.c.b16 %v1140, %v1139
        %v1299 = vpack.c.b16 %v1142, %v1141
        %v1300 = vpack.c.b16 %v1144, %v1143
        %v1301 = vpack.c.b16 %v1146, %v1145
        %v1302 = vpack.c.b16 %v1148, %v1147
        %v1303 = vpack.c.b16 %v1150, %v1149
        %v1304 = vpack.c.b16 %v1152, %v1151
        %v1305 = vpack.c.b16 %v1154, %v1153
        %v1306 = vpack.c.b16 %v1156, %v1155
        %v1307 = vpack.c.b16 %v1158, %v1157
        %v1308 = vpack.c.b16 %v1160, %v1159
        %v1309 = vpack.c.b16 %v1162, %v1161
        %v1310 = vpack.c.b16 %v1164, %v1163
        %v1311 = vpack.c.b16 %v1166, %v1165
        %v1312 = vpack.c.b16 %v1168, %v1167
        %v1313 = vpack.c.b16 %v1170, %v1169
        %v1314 = vpack.c.b16 %v1172, %v1171
        %v1315 = vpack.c.b16 %v1174, %v1173
        %v1316 = vpack.c.b16 %v1176, %v1175
        %v1317 = vpack.c.b16 %v1178, %v1177
        %v1318 = vpack.c.b16 %v1180, %v1179
        %v1319 = vpack.c.b16 %v1182, %v1181
        %v1320 = vpack.c.b16 %v1184, %v1183
        %v1321 = vpack.c.b16 %v1186, %v1185
        %v1322 = vpack.c.b16 %v1188, %v1187
        %v1323 = vpack.c.b16 %v1190, %v1189
        %v1324 = vpack.c.b16 %v1192, %v1191
        %v1325 = vpack.c.b16 %v1194, %v1193
        %v1326 = vpack.c.b16 %v1196, %v1195
        %v1327 = vpack.c.b16 %v1198, %v1197
        %v1328 = vpack.c.b16 %v1200, %v1199
        %v1329 = vpack.c.b16 %v1202, %v1201
        %v1330 = vpack.c.b16 %v1204, %v1203
        %v1331 = vpack.c.b16 %v1206, %v1205
        %v1332 = vpack.c.b16 %v1208, %v1207
        %v1333 = vpack.c.b16 %v1210, %v1209
        %v1334 = vpack.c.b16 %v1212, %v1211
        %v1335 = vpack.c.b16 %v1214, %v1213
        %v1336 = vpack.c.b16 %v1216, %v1215
        %v1337 = vpack.c.b16 %v1218, %v1217
        %v1338 = vpack.c.b16 %v1220, %v1219
        %v1339 = vpack.c.b16 %v1222, %v1221
        %v1340 = vpack.c.b16 %v1224, %v1223
        %v1341 = vpack.c.b16 %v1226, %v1225
        %v1342 = vpack.c.b16 %v1228, %v1227
        %v1343 = vpack.c.b16 %v1230, %v1229
        %v1344 = vpack.c.b16 %v1232, %v1231
        %v1345 = vpack.c.b16 %v1234, %v1233
        %v1346 = vpack.c.b16 %v1236, %v1235
        %v1347 = vpack.c.b16 %v1238, %v1237
        %v1348 = vpack.c.b16 %v1240, %v1239
        %vm1457 = vcmask 523264
        %v1459 = vsel %vm1457, %v714, 0
        %v1462 = vsel %vm1457, %v728, 0
        %v1465 = vsel %vm1457, %v742, 0
        %v1468 = vsel %vm1457, %v756, 0
        %1470 = vmatprep.subr.bf16.mxu0 0
        %1471 = vmatpush1.bf16.msra.mxu0 %v1248
        %1472 = vmatprep.subr.bf16.mxu0 0
        %1473 = vmatpush1.bf16.msra.mxu0 %v1247
        %1474 = vmatprep.subr.bf16.mxu0 0
        %1475 = vmatpush1.bf16.msra.mxu0 %v1246
        %1476 = vmatprep.subr.bf16.mxu0 0
        %1477 = vmatpush1.bf16.msra.mxu0 %v1245
        %1478 = vmatprep.subr.bf16.mxu0 0
        %1479 = vmatpush1.bf16.msra.mxu0 %v1244
        %1480 = vmatprep.subr.bf16.mxu0 0
        %1481 = vmatpush1.bf16.msra.mxu0 %v1243
        %1482 = vmatprep.subr.bf16.mxu0 0
        %1483 = vmatpush1.bf16.msra.mxu0 %v1242
        %1484 = vmatprep.subr.bf16.mxu0 0
        %1485 = vmatpush1.bf16.msra.mxu0 %v1241
        %1486 = vmatprep.subr.bf16.mxu0 0
        %1487 = vmatpush2.bf16.msra.mxu0 %v1256
        %1488 = vmatprep.subr.bf16.mxu0 0
        %1489 = vmatpush2.bf16.msra.mxu0 %v1255
        %1490 = vmatprep.subr.bf16.mxu0 0
        %1491 = vmatpush2.bf16.msra.mxu0 %v1254
        %1492 = vmatprep.subr.bf16.mxu0 0
        %1493 = vmatpush2.bf16.msra.mxu0 %v1253
        %1494 = vmatprep.subr.bf16.mxu0 0
        %1495 = vmatpush2.bf16.msra.mxu0 %v1252
        %1496 = vmatprep.subr.bf16.mxu0 0
        %1497 = vmatpush2.bf16.msra.mxu0 %v1251
        %1498 = vmatprep.subr.bf16.mxu0 0
        %1499 = vmatpush2.bf16.msra.mxu0 %v1250
        %1500 = vmatprep.subr.bf16.mxu0 0
        %1501 = vmatpush2.bf16.msra.mxu0 %v1249
        %1502 = vmatprep.mubr.bf16.mxu0 %v702
        %1503 = vmatmul.mubr.bf16.gmra.mxu0 %v701
        %v1504 = vpop.f32.mrf.mxu0
        %v1505 = vadd.f32 0.0, %v1504
        %v1506 = vpop.f32.mrf.mxu0
        %v1507 = vpop.f32.mrf.mxu0
        %v1508 = vadd.f32 0.0, %v1507
        %v1509 = vpop.f32.mrf.mxu0
        %1510 = vmatprep.mubr.bf16.mxu0 %v716
        %1511 = vmatmul.mubr.bf16.gmra.mxu0 %v715
        %v1512 = vpop.f32.mrf.mxu0
        %v1513 = vadd.f32 0.0, %v1512
        %v1514 = vpop.f32.mrf.mxu0
        %v1515 = vpop.f32.mrf.mxu0
        %v1516 = vadd.f32 0.0, %v1515
        %v1517 = vpop.f32.mrf.mxu0
        %1518 = vmatprep.mubr.bf16.mxu0 %v730
        %1519 = vmatmul.mubr.bf16.gmra.mxu0 %v729
        %v1520 = vpop.f32.mrf.mxu0
        %v1521 = vadd.f32 0.0, %v1520
        %v1522 = vpop.f32.mrf.mxu0
        %v1523 = vpop.f32.mrf.mxu0
        %v1524 = vadd.f32 0.0, %v1523
        %v1525 = vpop.f32.mrf.mxu0
        %1526 = vmatprep.mubr.bf16.mxu0 %v744
        %1527 = vmatmul.mubr.bf16.gmra.mxu0 %v743
        %v1528 = vpop.f32.mrf.mxu0
        %v1529 = vadd.f32 0.0, %v1528
        %v1530 = vpop.f32.mrf.mxu0
        %v1531 = vpop.f32.mrf.mxu0
        %v1532 = vadd.f32 0.0, %v1531
        %v1533 = vpop.f32.mrf.mxu0
        %1534 = vdwg.mxu0
        %1535 = vmatprep.subr.bf16.mxu0 0
        %1536 = vmatpush1.bf16.msra.mxu0 %v1264
        %1537 = vmatprep.subr.bf16.mxu0 0
        %1538 = vmatpush1.bf16.msra.mxu0 %v1263
        %1539 = vmatprep.subr.bf16.mxu0 0
        %1540 = vmatpush1.bf16.msra.mxu0 %v1262
        %1541 = vmatprep.subr.bf16.mxu0 0
        %1542 = vmatpush1.bf16.msra.mxu0 %v1261
        %1543 = vmatprep.subr.bf16.mxu0 0
        %1544 = vmatpush1.bf16.msra.mxu0 %v1260
        %1545 = vmatprep.subr.bf16.mxu0 0
        %1546 = vmatpush1.bf16.msra.mxu0 %v1259
        %1547 = vmatprep.subr.bf16.mxu0 0
        %1548 = vmatpush1.bf16.msra.mxu0 %v1258
        %1549 = vmatprep.subr.bf16.mxu0 0
        %1550 = vmatpush1.bf16.msra.mxu0 %v1257
        %1551 = vmatprep.subr.bf16.mxu0 0
        %1552 = vmatpush2.bf16.msra.mxu0 %v1272
        %1553 = vmatprep.subr.bf16.mxu0 0
        %1554 = vmatpush2.bf16.msra.mxu0 %v1271
        %1555 = vmatprep.subr.bf16.mxu0 0
        %1556 = vmatpush2.bf16.msra.mxu0 %v1270
        %1557 = vmatprep.subr.bf16.mxu0 0
        %1558 = vmatpush2.bf16.msra.mxu0 %v1269
        %1559 = vmatprep.subr.bf16.mxu0 0
        %1560 = vmatpush2.bf16.msra.mxu0 %v1268
        %1561 = vmatprep.subr.bf16.mxu0 0
        %1562 = vmatpush2.bf16.msra.mxu0 %v1267
        %1563 = vmatprep.subr.bf16.mxu0 0
        %1564 = vmatpush2.bf16.msra.mxu0 %v1266
        %1565 = vmatprep.subr.bf16.mxu0 0
        %1566 = vmatpush2.bf16.msra.mxu0 %v1265
        %1567 = vmatprep.mubr.bf16.mxu0 %v704
        %1568 = vmatmul.mubr.bf16.gmra.mxu0 %v703
        %v1569 = vpop.f32.mrf.mxu0
        %v1570 = vadd.f32 %v1505, %v1569
        %v1571 = vpop.f32.mrf.mxu0
        %v1572 = vpop.f32.mrf.mxu0
        %v1573 = vadd.f32 %v1508, %v1572
        %v1574 = vpop.f32.mrf.mxu0
        %1575 = vmatprep.mubr.bf16.mxu0 %v718
        %1576 = vmatmul.mubr.bf16.gmra.mxu0 %v717
        %v1577 = vpop.f32.mrf.mxu0
        %v1578 = vadd.f32 %v1513, %v1577
        %v1579 = vpop.f32.mrf.mxu0
        %v1580 = vpop.f32.mrf.mxu0
        %v1581 = vadd.f32 %v1516, %v1580
        %v1582 = vpop.f32.mrf.mxu0
        %1583 = vmatprep.mubr.bf16.mxu0 %v732
        %1584 = vmatmul.mubr.bf16.gmra.mxu0 %v731
        %v1585 = vpop.f32.mrf.mxu0
        %v1586 = vadd.f32 %v1521, %v1585
        %v1587 = vpop.f32.mrf.mxu0
        %v1588 = vpop.f32.mrf.mxu0
        %v1589 = vadd.f32 %v1524, %v1588
        %v1590 = vpop.f32.mrf.mxu0
        %1591 = vmatprep.mubr.bf16.mxu0 %v746
        %1592 = vmatmul.mubr.bf16.gmra.mxu0 %v745
        %v1593 = vpop.f32.mrf.mxu0
        %v1594 = vadd.f32 %v1529, %v1593
        %v1595 = vpop.f32.mrf.mxu0
        %v1596 = vpop.f32.mrf.mxu0
        %v1597 = vadd.f32 %v1532, %v1596
        %v1598 = vpop.f32.mrf.mxu0
        %1599 = vdwg.mxu0
        %1600 = vmatprep.subr.bf16.mxu0 0
        %1601 = vmatpush1.bf16.msra.mxu0 %v1280
        %1602 = vmatprep.subr.bf16.mxu0 0
        %1603 = vmatpush1.bf16.msra.mxu0 %v1279
        %1604 = vmatprep.subr.bf16.mxu0 0
        %1605 = vmatpush1.bf16.msra.mxu0 %v1278
        %1606 = vmatprep.subr.bf16.mxu0 0
        %1607 = vmatpush1.bf16.msra.mxu0 %v1277
        %1608 = vmatprep.subr.bf16.mxu0 0
        %1609 = vmatpush1.bf16.msra.mxu0 %v1276
        %1610 = vmatprep.subr.bf16.mxu0 0
        %1611 = vmatpush1.bf16.msra.mxu0 %v1275
        %1612 = vmatprep.subr.bf16.mxu0 0
        %1613 = vmatpush1.bf16.msra.mxu0 %v1274
        %1614 = vmatprep.subr.bf16.mxu0 0
        %1615 = vmatpush1.bf16.msra.mxu0 %v1273
        %1616 = vmatprep.subr.bf16.mxu0 0
        %1617 = vmatpush2.bf16.msra.mxu0 %v1288
        %1618 = vmatprep.subr.bf16.mxu0 0
        %1619 = vmatpush2.bf16.msra.mxu0 %v1287
        %1620 = vmatprep.subr.bf16.mxu0 0
        %1621 = vmatpush2.bf16.msra.mxu0 %v1286
        %1622 = vmatprep.subr.bf16.mxu0 0
        %1623 = vmatpush2.bf16.msra.mxu0 %v1285
        %1624 = vmatprep.subr.bf16.mxu0 0
        %1625 = vmatpush2.bf16.msra.mxu0 %v1284
        %1626 = vmatprep.subr.bf16.mxu0 0
        %1627 = vmatpush2.bf16.msra.mxu0 %v1283
        %1628 = vmatprep.subr.bf16.mxu0 0
        %1629 = vmatpush2.bf16.msra.mxu0 %v1282
        %1630 = vmatprep.subr.bf16.mxu0 0
        %1631 = vmatpush2.bf16.msra.mxu0 %v1281
        %1632 = vmatprep.mubr.bf16.mxu0 %v706
        %1633 = vmatmul.mubr.bf16.gmra.mxu0 %v705
        %v1634 = vpop.f32.mrf.mxu0
        %v1635 = vadd.f32 %v1570, %v1634
        %v1636 = vpop.f32.mrf.mxu0
        %v1637 = vpop.f32.mrf.mxu0
        %v1638 = vadd.f32 %v1573, %v1637
        %v1639 = vpop.f32.mrf.mxu0
        %1640 = vmatprep.mubr.bf16.mxu0 %v720
        %1641 = vmatmul.mubr.bf16.gmra.mxu0 %v719
        %v1642 = vpop.f32.mrf.mxu0
        %v1643 = vadd.f32 %v1578, %v1642
        %v1644 = vpop.f32.mrf.mxu0
        %v1645 = vpop.f32.mrf.mxu0
        %v1646 = vadd.f32 %v1581, %v1645
        %v1647 = vpop.f32.mrf.mxu0
        %1648 = vmatprep.mubr.bf16.mxu0 %v734
        %1649 = vmatmul.mubr.bf16.gmra.mxu0 %v733
        %v1650 = vpop.f32.mrf.mxu0
        %v1651 = vadd.f32 %v1586, %v1650
        %v1652 = vpop.f32.mrf.mxu0
        %v1653 = vpop.f32.mrf.mxu0
        %v1654 = vadd.f32 %v1589, %v1653
        %v1655 = vpop.f32.mrf.mxu0
        %1656 = vmatprep.mubr.bf16.mxu0 %v748
        %1657 = vmatmul.mubr.bf16.gmra.mxu0 %v747
        %v1658 = vpop.f32.mrf.mxu0
        %v1659 = vadd.f32 %v1594, %v1658
        %v1660 = vpop.f32.mrf.mxu0
        %v1661 = vpop.f32.mrf.mxu0
        %v1662 = vadd.f32 %v1597, %v1661
        %v1663 = vpop.f32.mrf.mxu0
        %1664 = vdwg.mxu0
        %1665 = vmatprep.subr.bf16.mxu0 0
        %1666 = vmatpush1.bf16.msra.mxu0 %v1296
        %1667 = vmatprep.subr.bf16.mxu0 0
        %1668 = vmatpush1.bf16.msra.mxu0 %v1295
        %1669 = vmatprep.subr.bf16.mxu0 0
        %1670 = vmatpush1.bf16.msra.mxu0 %v1294
        %1671 = vmatprep.subr.bf16.mxu0 0
        %1672 = vmatpush1.bf16.msra.mxu0 %v1293
        %1673 = vmatprep.subr.bf16.mxu0 0
        %1674 = vmatpush1.bf16.msra.mxu0 %v1292
        %1675 = vmatprep.subr.bf16.mxu0 0
        %1676 = vmatpush1.bf16.msra.mxu0 %v1291
        %1677 = vmatprep.subr.bf16.mxu0 0
        %1678 = vmatpush1.bf16.msra.mxu0 %v1290
        %1679 = vmatprep.subr.bf16.mxu0 0
        %1680 = vmatpush1.bf16.msra.mxu0 %v1289
        %1681 = vmatprep.subr.bf16.mxu0 0
        %1682 = vmatpush2.bf16.msra.mxu0 %v1304
        %1683 = vmatprep.subr.bf16.mxu0 0
        %1684 = vmatpush2.bf16.msra.mxu0 %v1303
        %1685 = vmatprep.subr.bf16.mxu0 0
        %1686 = vmatpush2.bf16.msra.mxu0 %v1302
        %1687 = vmatprep.subr.bf16.mxu0 0
        %1688 = vmatpush2.bf16.msra.mxu0 %v1301
        %1689 = vmatprep.subr.bf16.mxu0 0
        %1690 = vmatpush2.bf16.msra.mxu0 %v1300
        %1691 = vmatprep.subr.bf16.mxu0 0
        %1692 = vmatpush2.bf16.msra.mxu0 %v1299
        %1693 = vmatprep.subr.bf16.mxu0 0
        %1694 = vmatpush2.bf16.msra.mxu0 %v1298
        %1695 = vmatprep.subr.bf16.mxu0 0
        %1696 = vmatpush2.bf16.msra.mxu0 %v1297
        %1697 = vmatprep.mubr.bf16.mxu0 %v708
        %1698 = vmatmul.mubr.bf16.gmra.mxu0 %v707
        %v1699 = vpop.f32.mrf.mxu0
        %v1700 = vadd.f32 %v1635, %v1699
        %v1701 = vpop.f32.mrf.mxu0
        %v1702 = vpop.f32.mrf.mxu0
        %v1703 = vadd.f32 %v1638, %v1702
        %v1704 = vpop.f32.mrf.mxu0
        %1705 = vmatprep.mubr.bf16.mxu0 %v722
        %1706 = vmatmul.mubr.bf16.gmra.mxu0 %v721
        %v1707 = vpop.f32.mrf.mxu0
        %v1708 = vadd.f32 %v1643, %v1707
        %v1709 = vpop.f32.mrf.mxu0
        %v1710 = vpop.f32.mrf.mxu0
        %v1711 = vadd.f32 %v1646, %v1710
        %v1712 = vpop.f32.mrf.mxu0
        %1713 = vmatprep.mubr.bf16.mxu0 %v736
        %1714 = vmatmul.mubr.bf16.gmra.mxu0 %v735
        %v1715 = vpop.f32.mrf.mxu0
        %v1716 = vadd.f32 %v1651, %v1715
        %v1717 = vpop.f32.mrf.mxu0
        %v1718 = vpop.f32.mrf.mxu0
        %v1719 = vadd.f32 %v1654, %v1718
        %v1720 = vpop.f32.mrf.mxu0
        %1721 = vmatprep.mubr.bf16.mxu0 %v750
        %1722 = vmatmul.mubr.bf16.gmra.mxu0 %v749
        %v1723 = vpop.f32.mrf.mxu0
        %v1724 = vadd.f32 %v1659, %v1723
        %v1725 = vpop.f32.mrf.mxu0
        %v1726 = vpop.f32.mrf.mxu0
        %v1727 = vadd.f32 %v1662, %v1726
        %v1728 = vpop.f32.mrf.mxu0
        %1729 = vdwg.mxu0
        %1730 = vmatprep.subr.bf16.mxu0 0
        %1731 = vmatpush1.bf16.msra.mxu0 %v1312
        %1732 = vmatprep.subr.bf16.mxu0 0
        %1733 = vmatpush1.bf16.msra.mxu0 %v1311
        %1734 = vmatprep.subr.bf16.mxu0 0
        %1735 = vmatpush1.bf16.msra.mxu0 %v1310
        %1736 = vmatprep.subr.bf16.mxu0 0
        %1737 = vmatpush1.bf16.msra.mxu0 %v1309
        %1738 = vmatprep.subr.bf16.mxu0 0
        %1739 = vmatpush1.bf16.msra.mxu0 %v1308
        %1740 = vmatprep.subr.bf16.mxu0 0
        %1741 = vmatpush1.bf16.msra.mxu0 %v1307
        %1742 = vmatprep.subr.bf16.mxu0 0
        %1743 = vmatpush1.bf16.msra.mxu0 %v1306
        %1744 = vmatprep.subr.bf16.mxu0 0
        %1745 = vmatpush1.bf16.msra.mxu0 %v1305
        %1746 = vmatprep.subr.bf16.mxu0 0
        %1747 = vmatpush2.bf16.msra.mxu0 %v1320
        %1748 = vmatprep.subr.bf16.mxu0 0
        %1749 = vmatpush2.bf16.msra.mxu0 %v1319
        %1750 = vmatprep.subr.bf16.mxu0 0
        %1751 = vmatpush2.bf16.msra.mxu0 %v1318
        %1752 = vmatprep.subr.bf16.mxu0 0
        %1753 = vmatpush2.bf16.msra.mxu0 %v1317
        %1754 = vmatprep.subr.bf16.mxu0 0
        %1755 = vmatpush2.bf16.msra.mxu0 %v1316
        %1756 = vmatprep.subr.bf16.mxu0 0
        %1757 = vmatpush2.bf16.msra.mxu0 %v1315
        %1758 = vmatprep.subr.bf16.mxu0 0
        %1759 = vmatpush2.bf16.msra.mxu0 %v1314
        %1760 = vmatprep.subr.bf16.mxu0 0
        %1761 = vmatpush2.bf16.msra.mxu0 %v1313
        %1762 = vmatprep.mubr.bf16.mxu0 %v710
        %1763 = vmatmul.mubr.bf16.gmra.mxu0 %v709
        %v1764 = vpop.f32.mrf.mxu0
        %v1765 = vadd.f32 %v1700, %v1764
        %v1766 = vpop.f32.mrf.mxu0
        %v1767 = vpop.f32.mrf.mxu0
        %v1768 = vadd.f32 %v1703, %v1767
        %v1769 = vpop.f32.mrf.mxu0
        %1770 = vmatprep.mubr.bf16.mxu0 %v724
        %1771 = vmatmul.mubr.bf16.gmra.mxu0 %v723
        %v1772 = vpop.f32.mrf.mxu0
        %v1773 = vadd.f32 %v1708, %v1772
        %v1774 = vpop.f32.mrf.mxu0
        %v1775 = vpop.f32.mrf.mxu0
        %v1776 = vadd.f32 %v1711, %v1775
        %v1777 = vpop.f32.mrf.mxu0
        %1778 = vmatprep.mubr.bf16.mxu0 %v738
        %1779 = vmatmul.mubr.bf16.gmra.mxu0 %v737
        %v1780 = vpop.f32.mrf.mxu0
        %v1781 = vadd.f32 %v1716, %v1780
        %v1782 = vpop.f32.mrf.mxu0
        %v1783 = vpop.f32.mrf.mxu0
        %v1784 = vadd.f32 %v1719, %v1783
        %v1785 = vpop.f32.mrf.mxu0
        %1786 = vmatprep.mubr.bf16.mxu0 %v752
        %1787 = vmatmul.mubr.bf16.gmra.mxu0 %v751
        %v1788 = vpop.f32.mrf.mxu0
        %v1789 = vadd.f32 %v1724, %v1788
        %v1790 = vpop.f32.mrf.mxu0
        %v1791 = vpop.f32.mrf.mxu0
        %v1792 = vadd.f32 %v1727, %v1791
        %v1793 = vpop.f32.mrf.mxu0
        %1794 = vdwg.mxu0
        %1795 = vmatprep.subr.bf16.mxu0 0
        %1796 = vmatpush1.bf16.msra.mxu0 %v1328
        %1797 = vmatprep.subr.bf16.mxu0 0
        %1798 = vmatpush1.bf16.msra.mxu0 %v1327
        %1799 = vmatprep.subr.bf16.mxu0 0
        %1800 = vmatpush1.bf16.msra.mxu0 %v1326
        %1801 = vmatprep.subr.bf16.mxu0 0
        %1802 = vmatpush1.bf16.msra.mxu0 %v1325
        %1803 = vmatprep.subr.bf16.mxu0 0
        %1804 = vmatpush1.bf16.msra.mxu0 %v1324
        %1805 = vmatprep.subr.bf16.mxu0 0
        %1806 = vmatpush1.bf16.msra.mxu0 %v1323
        %1807 = vmatprep.subr.bf16.mxu0 0
        %1808 = vmatpush1.bf16.msra.mxu0 %v1322
        %1809 = vmatprep.subr.bf16.mxu0 0
        %1810 = vmatpush1.bf16.msra.mxu0 %v1321
        %1811 = vmatprep.subr.bf16.mxu0 0
        %1812 = vmatpush2.bf16.msra.mxu0 %v1336
        %1813 = vmatprep.subr.bf16.mxu0 0
        %1814 = vmatpush2.bf16.msra.mxu0 %v1335
        %1815 = vmatprep.subr.bf16.mxu0 0
        %1816 = vmatpush2.bf16.msra.mxu0 %v1334
        %1817 = vmatprep.subr.bf16.mxu0 0
        %1818 = vmatpush2.bf16.msra.mxu0 %v1333
        %1819 = vmatprep.subr.bf16.mxu0 0
        %1820 = vmatpush2.bf16.msra.mxu0 %v1332
        %1821 = vmatprep.subr.bf16.mxu0 0
        %1822 = vmatpush2.bf16.msra.mxu0 %v1331
        %1823 = vmatprep.subr.bf16.mxu0 0
        %1824 = vmatpush2.bf16.msra.mxu0 %v1330
        %1825 = vmatprep.subr.bf16.mxu0 0
        %1826 = vmatpush2.bf16.msra.mxu0 %v1329
        %1827 = vmatprep.mubr.bf16.mxu0 %v712
        %1828 = vmatmul.mubr.bf16.gmra.mxu0 %v711
        %v1829 = vpop.f32.mrf.mxu0
        %v1830 = vadd.f32 %v1765, %v1829
        %v1831 = vpop.f32.mrf.mxu0
        %v1832 = vpop.f32.mrf.mxu0
        %v1833 = vadd.f32 %v1768, %v1832
        %v1834 = vpop.f32.mrf.mxu0
        %1835 = vmatprep.mubr.bf16.mxu0 %v726
        %1836 = vmatmul.mubr.bf16.gmra.mxu0 %v725
        %v1837 = vpop.f32.mrf.mxu0
        %v1838 = vadd.f32 %v1773, %v1837
        %v1839 = vpop.f32.mrf.mxu0
        %v1840 = vpop.f32.mrf.mxu0
        %v1841 = vadd.f32 %v1776, %v1840
        %v1842 = vpop.f32.mrf.mxu0
        %1843 = vmatprep.mubr.bf16.mxu0 %v740
        %1844 = vmatmul.mubr.bf16.gmra.mxu0 %v739
        %v1845 = vpop.f32.mrf.mxu0
        %v1846 = vadd.f32 %v1781, %v1845
        %v1847 = vpop.f32.mrf.mxu0
        %v1848 = vpop.f32.mrf.mxu0
        %v1849 = vadd.f32 %v1784, %v1848
        %v1850 = vpop.f32.mrf.mxu0
        %1851 = vmatprep.mubr.bf16.mxu0 %v754
        %1852 = vmatmul.mubr.bf16.gmra.mxu0 %v753
        %v1853 = vpop.f32.mrf.mxu0
        %v1854 = vadd.f32 %v1789, %v1853
        %v1855 = vpop.f32.mrf.mxu0
        %v1856 = vpop.f32.mrf.mxu0
        %v1857 = vadd.f32 %v1792, %v1856
        %v1858 = vpop.f32.mrf.mxu0
        %1859 = vdwg.mxu0
        %1860 = vmatprep.subr.bf16.mxu0 0
        %1861 = vmatpush1.bf16.msra.mxu0 %v1344
        %1862 = vmatprep.subr.bf16.mxu0 0
        %1863 = vmatpush1.bf16.msra.mxu0 %v1343
        %1864 = vmatprep.subr.bf16.mxu0 0
        %1865 = vmatpush1.bf16.msra.mxu0 %v1342
        %1866 = vmatprep.subr.bf16.mxu0 0
        %1867 = vmatpush1.bf16.msra.mxu0 %v1341
        %1868 = vmatprep.subr.bf16.mxu0 0
        %1869 = vmatpush1.bf16.msra.mxu0 %v1340
        %1870 = vmatprep.subr.bf16.mxu0 0
        %1871 = vmatpush1.bf16.msra.mxu0 %v1339
        %1872 = vmatprep.subr.bf16.mxu0 0
        %1873 = vmatpush1.bf16.msra.mxu0 %v1338
        %1874 = vmatprep.subr.bf16.mxu0 0
        %1875 = vmatpush1.bf16.msra.mxu0 %v1337
        %1876 = vmatprep.subr.bf16.mxu0 0
        %1877 = vmatpush2.bf16.msra.mxu0 0
        %1878 = vmatprep.subr.bf16.mxu0 0
        %1879 = vmatpush2.bf16.msra.mxu0 0
        %1880 = vmatprep.subr.bf16.mxu0 0
        %1881 = vmatpush2.bf16.msra.mxu0 0
        %1882 = vmatprep.subr.bf16.mxu0 0
        %1883 = vmatpush2.bf16.msra.mxu0 0
        %1884 = vmatprep.subr.bf16.mxu0 0
        %1885 = vmatpush2.bf16.msra.mxu0 %v1348
        %1886 = vmatprep.subr.bf16.mxu0 0
        %1887 = vmatpush2.bf16.msra.mxu0 %v1347
        %1888 = vmatprep.subr.bf16.mxu0 0
        %1889 = vmatpush2.bf16.msra.mxu0 %v1346
        %1890 = vmatprep.subr.bf16.mxu0 0
        %1891 = vmatpush2.bf16.msra.mxu0 %v1345
        %1892 = vmatprep.mubr.bf16.mxu0 %v1459
        %1893 = vmatmul.mubr.bf16.gmra.mxu0 %v713
        %v1894 = vpop.f32.mrf.mxu0
        %v1895 = vadd.f32 %v1830, %v1894
        %v1896 = vpop.f32.mrf.mxu0
        %v1897 = vpop.f32.mrf.mxu0
        %v1898 = vadd.f32 %v1833, %v1897
        %v1899 = vpop.f32.mrf.mxu0
        %1900 = vmatprep.mubr.bf16.mxu0 %v1462
        %1901 = vmatmul.mubr.bf16.gmra.mxu0 %v727
        %v1902 = vpop.f32.mrf.mxu0
        %v1903 = vadd.f32 %v1838, %v1902
        %v1904 = vpop.f32.mrf.mxu0
        %v1905 = vpop.f32.mrf.mxu0
        %v1906 = vadd.f32 %v1841, %v1905
        %v1907 = vpop.f32.mrf.mxu0
        %1908 = vmatprep.mubr.bf16.mxu0 %v1465
        %1909 = vmatmul.mubr.bf16.gmra.mxu0 %v741
        %v1910 = vpop.f32.mrf.mxu0
        %v1911 = vadd.f32 %v1846, %v1910
        %v1912 = vpop.f32.mrf.mxu0
        %v1913 = vpop.f32.mrf.mxu0
        %v1914 = vadd.f32 %v1849, %v1913
        %v1915 = vpop.f32.mrf.mxu0
        %1916 = vmatprep.mubr.bf16.mxu0 %v1468
        %1917 = vmatmul.mubr.bf16.gmra.mxu0 %v755
        %v1918 = vpop.f32.mrf.mxu0
        %v1919 = vadd.f32 %v1854, %v1918
        %v1920 = vpop.f32.mrf.mxu0
        %v1921 = vpop.f32.mrf.mxu0
        %v1922 = vadd.f32 %v1857, %v1921
        %v1923 = vpop.f32.mrf.mxu0
        %1924 = vdwg.mxu0
        %s1925 = smul.u32 %s20, 64
        %s1926 = scalar_lea.vmem [#allocation2], %s1925
        %1927 = vst [vmem:[%s1926] sm:$0xff] %v1895
        %1928 = vst [vmem:[%s1926 + $0x8] sm:$0xff] %v1898
        %1929 = vst [vmem:[%s1926 + $0x10] sm:$0xff] %v1903
        %1930 = vst [vmem:[%s1926 + $0x18] sm:$0xff] %v1906
        %1931 = vst [vmem:[%s1926 + $0x20] sm:$0xff] %v1911
        %1932 = vst [vmem:[%s1926 + $0x28] sm:$0xff] %v1914
        %1933 = vst [vmem:[%s1926 + $0x30] sm:$0xff] %v1919
        %1934 = vst [vmem:[%s1926 + $0x38] sm:$0xff] %v1922
        %v1935 = vld [vmem:[#allocation3] sm:$0x1]
        %v1936 = vadd.f32 %v1895, %v1898
        %v1937 = vadd.f32 %v1936, %v1903
        %v1938 = vadd.f32 %v1937, %v1906
        %v1939 = vadd.f32 %v1938, %v1911
        %v1940 = vadd.f32 %v1939, %v1914
        %v1941 = vadd.f32 %v1940, %v1919
        %v1942 = vadd.f32 %v1941, %v1922
        %v1943 = vrot.slane %v1942, 4
        %v1944 = vadd.f32 %v1942, %v1943
        %v1945 = vrot.slane %v1944, 2
        %v1946 = vadd.f32 %v1944, %v1945
        %v1947 = vrot.slane %v1946, 1
        %v1948 = vadd.f32 %v1946, %v1947
        %v1949 = vadd.f32 %v1935, %v1948
        %1950 = vst [vmem:[#allocation3] sm:$0x1] %v1949
        %v1951 = vld [vmem:[#allocation4] sm:$0x1]
        %v1952 = vmul.f32 %v1895, %v1895
        %v1953 = vmul.f32 %v1898, %v1898
        %v1954 = vmul.f32 %v1903, %v1903
        %v1955 = vmul.f32 %v1906, %v1906
        %v1956 = vmul.f32 %v1911, %v1911
        %v1957 = vmul.f32 %v1914, %v1914
        %v1958 = vmul.f32 %v1919, %v1919
        %v1959 = vmul.f32 %v1922, %v1922
        %v1960 = vadd.f32 %v1952, %v1953
        %v1961 = vadd.f32 %v1960, %v1954
        %v1962 = vadd.f32 %v1961, %v1955
        %v1963 = vadd.f32 %v1962, %v1956
        %v1964 = vadd.f32 %v1963, %v1957
        %v1965 = vadd.f32 %v1964, %v1958
        %v1966 = vadd.f32 %v1965, %v1959
        %v1967 = vrot.slane %v1966, 4
        %v1968 = vadd.f32 %v1966, %v1967
        %v1969 = vrot.slane %v1968, 2
        %v1970 = vadd.f32 %v1968, %v1969
        %v1971 = vrot.slane %v1970, 1
        %v1972 = vadd.f32 %v1970, %v1971
        %v1973 = vadd.f32 %v1951, %v1972
        %1974 = vst [vmem:[#allocation4] sm:$0x1] %v1973
      $region44: #{spatio_temporal_conv.1} parent=35 // pred_fallthru
        _
      %p1975 = scmp.eq.s32.totalorder %s19, 1
      %p1976 = pnand %p1975, %p251
      %p1977 = pneg %p1976
      // Predicated region
      $region45: #{spatio_temporal_conv.1} parent=35 // pred_check
        _
      $region46: #{spatio_temporal_conv.1} parent=35 // pred_check_branch
        %1979 = sbr.rel (%p1976) target = $region48
      $region47: #{spatio_temporal_conv.1} parent=35 // pred_region
        %v1980 = vld [vmem:[#allocation3] sm:$0x1]
        %v1981 = vld [vmem:[#allocation4] sm:$0x1]
        %1982 = vrot.lane.b32.xlu0 %v1980, 8
        %v1983 = vpop.permute.xlu0 %1982
        %v1984 = vadd.f32 %v1980, %v1983
        %1985 = vrot.lane.b32.xlu0 %v1981, 8
        %v1986 = vpop.permute.xlu0 %1985
        %v1987 = vadd.f32 %v1981, %v1986
        %1988 = vrot.lane.b32.xlu0 %v1984, 16
        %v1989 = vpop.permute.xlu0 %1988
        %v1990 = vadd.f32 %v1984, %v1989
        %1991 = vrot.lane.b32.xlu0 %v1987, 16
        %v1992 = vpop.permute.xlu0 %1991
        %v1993 = vadd.f32 %v1987, %v1992
        %1994 = vrot.lane.b32.xlu0 %v1990, 32
        %v1995 = vpop.permute.xlu0 %1994
        %v1996 = vadd.f32 %v1990, %v1995
        %1997 = vrot.lane.b32.xlu0 %v1993, 32
        %v1998 = vpop.permute.xlu0 %1997
        %v1999 = vadd.f32 %v1993, %v1998
        %2000 = vrot.lane.b32.xlu0 %v1996, 64
        %v2001 = vpop.permute.xlu0 %2000
        %v2002 = vadd.f32 %v1996, %v2001
        %2003 = vrot.lane.b32.xlu0 %v1999, 64
        %v2004 = vpop.permute.xlu0 %2003
        %v2005 = vadd.f32 %v1999, %v2004
        %v2006 = vmul.f32 %v2002, 0.00024414063
        %v2007 = vmul.f32 %v2005, 0.00024414063
        %v2008 = vmul.f32 %v2006, %v2006
        %v2009 = vsub.f32 %v2007, %v2008
        %v2010 = vmax.f32 %v2009, 0.0
        %v2011 = vadd.f32 %v2010, 1e-05
        %v2012 = vrsqrt.pop %v2011
        %v2013 = vld [vmem:[%s2] sm:$0x1]
        %v2014 = vmul.f32 %v2013, %v2012
        %2015 = vst [vmem:[#allocation5] sm:$0x1] %v2014
        %v2016 = vld [vmem:[%s3] sm:$0x1]
        %v2017 = vld [vmem:[#allocation5] sm:$0x1]
        %v2018 = vmul.f32 %v2006, %v2017
        %v2019 = vsub.f32 %v2016, %v2018
        %2020 = vst [vmem:[#allocation6] sm:$0x1] %v2019
      $region48: #{spatio_temporal_conv.1} parent=35 // pred_fallthru
        _
      // Predicated region
      $region49: #{spatio_temporal_conv.1} parent=35 // pred_check
        %p2021 = pneg %p1975
      $region50: #{spatio_temporal_conv.1} parent=35 // pred_check_branch
        %2023 = sbr.rel (%p2021) target = $region52
      $region51: #{spatio_temporal_conv.1} parent=35 // pred_region
        %s2024 = smul.u32 %s20, 64
        %s2025 = scalar_lea.vmem [#allocation2], %s2024
        %v2026 = vld [vmem:[%s2025] sm:$0xff]
        %v2027 = vld [vmem:[%s2025 + $0x8] sm:$0xff]
        %v2028 = vld [vmem:[%s2025 + $0x10] sm:$0xff]
        %v2029 = vld [vmem:[%s2025 + $0x18] sm:$0xff]
        %v2030 = vld [vmem:[%s2025 + $0x20] sm:$0xff]
        %v2031 = vld [vmem:[%s2025 + $0x28] sm:$0xff]
        %v2032 = vld [vmem:[%s2025 + $0x30] sm:$0xff]
        %v2033 = vld [vmem:[%s2025 + $0x38] sm:$0xff]
        %v2034 = vld [vmem:[#allocation5] sm:$0x1]
        %v2036 = vlaneseq
        %v2037 = vshrl.u32 %v2036, 7
        %v2038 = vsub.s32 0, %v2037
        %v2039 = vrot.slane %v2034, %v2038
        %v2041 = vmul.f32 %v2026, %v2039
        %v2042 = vmul.f32 %v2027, %v2039
        %v2043 = vmul.f32 %v2028, %v2039
        %v2044 = vmul.f32 %v2029, %v2039
        %v2045 = vmul.f32 %v2030, %v2039
        %v2046 = vmul.f32 %v2031, %v2039
        %v2047 = vmul.f32 %v2032, %v2039
        %v2048 = vmul.f32 %v2033, %v2039
        %v2049 = vld [vmem:[#allocation6] sm:$0x1]
        %v2051 = vlaneseq
        %v2052 = vshrl.u32 %v2051, 7
        %v2053 = vsub.s32 0, %v2052
        %v2054 = vrot.slane %v2049, %v2053
        %v2056 = vadd.f32 %v2041, %v2054
        %v2057 = vadd.f32 %v2042, %v2054
        %v2058 = vadd.f32 %v2043, %v2054
        %v2059 = vadd.f32 %v2044, %v2054
        %v2060 = vadd.f32 %v2045, %v2054
        %v2061 = vadd.f32 %v2046, %v2054
        %v2062 = vadd.f32 %v2047, %v2054
        %v2063 = vadd.f32 %v2048, %v2054
        %v2064 = vmax.f32 %v2056, 0.0
        %v2065 = vmax.f32 %v2057, 0.0
        %v2066 = vmax.f32 %v2058, 0.0
        %v2067 = vmax.f32 %v2059, 0.0
        %v2068 = vmax.f32 %v2060, 0.0
        %v2069 = vmax.f32 %v2061, 0.0
        %v2070 = vmax.f32 %v2062, 0.0
        %v2071 = vmax.f32 %v2063, 0.0
        %v2072 = vpack.c.bf16 %v2065, %v2064
        %v2073 = vpack.c.bf16 %v2067, %v2066
        %v2074 = vpack.c.bf16 %v2069, %v2068
        %v2075 = vpack.c.bf16 %v2071, %v2070
        %v2080 = vunpack.c.l.b16 %v2072
        %v2081 = vunpack.c.h.b16 %v2072
        %v2082 = vunpack.c.l.b16 %v2073
        %v2083 = vunpack.c.h.b16 %v2073
        %v2084 = vunpack.c.l.b16 %v2074
        %v2085 = vunpack.c.h.b16 %v2074
        %v2086 = vunpack.c.l.b16 %v2075
        %v2087 = vunpack.c.h.b16 %v2075
        %v2088 = vpack.c.b16 %v2080, %v2080
        %v2089 = vpack.c.b16 %v2081, %v2081
        %v2090 = vpack.c.b16 %v2082, %v2082
        %v2091 = vpack.c.b16 %v2083, %v2083
        %v2092 = vpack.c.b16 %v2084, %v2084
        %v2093 = vpack.c.b16 %v2085, %v2085
        %v2094 = vpack.c.b16 %v2086, %v2086
        %v2095 = vpack.c.b16 %v2087, %v2087
        %2104 = vst [vmem:[%s246] sm:$0xf] %v2088
        %2105 = vst [vmem:[%s246 + $0x4] sm:$0xf] %v2089
        %2106 = vst [vmem:[%s246 + $0x8] sm:$0xf] %v2090
        %2107 = vst [vmem:[%s246 + $0xc] sm:$0xf] %v2091
        %2108 = vst [vmem:[%s246 + $0x10] sm:$0xf] %v2092
        %2109 = vst [vmem:[%s246 + $0x14] sm:$0xf] %v2093
        %2110 = vst [vmem:[%s246 + $0x18] sm:$0xf] %v2094
        %2111 = vst [vmem:[%s246 + $0x1c] sm:$0xf] %v2095
      $region52: #{spatio_temporal_conv.1} parent=35 // pred_fallthru
        _
      %s2112 = smul.u32 %s19, %s20
      %s2113 = smul.u32 8, %s2112
      %p2114 = scmp.lt.s32.totalorder %s2113, 31
      %s2115 = scalar_select %p2114, %s2113, 31
      %s2116 = smul.addr %s2115, 4
      %s2117 = scalar_lea.vmem %s4, %s2116
      // Predicated region
      $region53: #{spatio_temporal_conv.1} parent=35 // pred_check
        %p2118 = pneg %p144
      $region54: #{spatio_temporal_conv.1} parent=35 // pred_check_branch
        %2120 = sbr.rel (%p2118) target = $region56
      $region55: #{spatio_temporal_conv.1} parent=35 // pred_region
        %s2121 = smul.u32 %s19, %s20
        %s2122 = smul.u32 8, %s2121
      $region56: #{spatio_temporal_conv.1} parent=35 // pred_fallthru
        _
    $region36: #{spatio_temporal_conv.1} parent=5 // pred_fallthru
      _
    %p2123 = scmp.le.s32.totalorder 2, %s10
    // Predicated region
    $region57: #{spatio_temporal_conv.1} parent=5 // pred_check
      %p2124 = pneg %p2123
    $region58: #{spatio_temporal_conv.1} parent=5 // pred_check_branch
      %2126 = sbr.rel (%p2124) target = $region60
    $region59: #{spatio_temporal_conv.1} parent=5 // pred_region
      %s2127 = ssub.s32 %s10, 2
      // Predicated region
      $region61: #{spatio_temporal_conv.1} parent=59 // pred_check
        %p2128 = pneg %p150
      $region62: #{spatio_temporal_conv.1} parent=59 // pred_check_branch
        %2130 = sbr.rel (%p2128) target = $region64
      $region63: #{spatio_temporal_conv.1} parent=59 // pred_region
        %s2131 = smul.u32 %s21, %s22
        %s2132 = smul.u32 8, %s2131
        %p2133 = scmp.lt.s32.totalorder %s2132, 31
        %s2134 = scalar_select %p2133, %s2132, 31
        %s2135 = smul.addr %s2134, 4
        %s2136 = scalar_lea.vmem %s4, %s2135
      $region64: #{spatio_temporal_conv.1} parent=59 // pred_fallthru
        _
    $region60: #{spatio_temporal_conv.1} parent=5 // pred_fallthru
      _
  $region6: #{spatio_temporal_conv.1} parent=0 // loop_footer
    %s14 = sadd.s32 1, %s10
  $region7: #{spatio_temporal_conv.1} parent=0 // loop_footer_branch
    %9 = sbr.rel target = $region3
  $region8: #{spatio_temporal_conv.1} parent=0 // loop_exit
    _

</llo_original>
